<compile_context>
chip_gen: v7x
topology: tpu7x:2x2x1
jax: 0.10.0
libtpu: 0.0.40
codegen_flags: <defaults>
</compile_context>

<pallas_src>
import math
import jax
import jax.numpy as jnp
from jax.experimental import pallas as pl
from jax.experimental.pallas import tpu as pltpu


def _moa_kernel(x_ref, g_ref, o_ref):
    # x_ref: (TR, D)   g_ref: (TR, 1)   o_ref: (TR, D)
    x = x_ref[...].astype(jnp.float32)
    g = g_ref[...].astype(jnp.float32)          # per-row sum of gating scores
    o_ref[...] = (x * g).astype(o_ref.dtype)    # lane-dense broadcast multiply


def _pick_row_tile(n_rows, target):
    """Largest row tile <= target that divides n_rows (multiple of 8 sublanes)."""
    if n_rows <= target:
        return n_rows
    t = min(target, n_rows)
    t -= t % 8
    while t >= 8:
        if n_rows % t == 0:
            return t
        t -= 8
    return n_rows  # fall back to a single block


def mixture_of_adapters_forward(x, gating_scores, *, row_tile=512):
    """x: (B, S, D); gating_scores: (B, S, A) -> (B, S, D) (same dtype as x)."""
    B, S, D = x.shape
    _, _, A = gating_scores.shape
    rows = B * S

    x2 = x.reshape(rows, D)
    # Reassociation: sum_a g[..., a] * adapter_a(x) with identity adapters
    # == x * sum_a g[..., a].  The tiny (rows, A) reduce is hoisted here so the
    # kernel only streams a (rows, 1) factor (avoids 4-lane-wide masked loads
    # and an in-kernel cross-lane reduce over only A elements).
    gsum = jnp.sum(
        gating_scores.reshape(rows, A).astype(jnp.float32),
        axis=-1, keepdims=True,
    )  # (rows, 1) f32

    tile = _pick_row_tile(rows, row_tile)
    grid = (rows // tile,)

    out2 = pl.pallas_call(
        _moa_kernel,
        out_shape=jax.ShapeDtypeStruct((rows, D), x.dtype),
        grid_spec=pltpu.PrefetchScalarGridSpec(
            num_scalar_prefetch=0,
            grid=grid,
            in_specs=[
                pl.BlockSpec((tile, D), lambda i: (i, 0)),
                pl.BlockSpec((tile, 1), lambda i: (i, 0)),
            ],
            out_specs=pl.BlockSpec((tile, D), lambda i: (i, 0)),
        ),
        compiler_params=pltpu.CompilerParams(
            dimension_semantics=("parallel",),
        ),
    )(x2, gsum)

    return out2.reshape(B, S, D)


def init_params(key, input_dim, output_dim, num_adapters, rank):
    """Parameter shapes mirroring the PyTorch module's __init__.

    With active=None the LoRA adapters are identity in the forward pass
    (exactly like the reference), so these weights do not affect the output.
    # TODO(synk): the active != None LoRA path (x @ down.T @ up.T, MXU matmuls)
    # is never executed by MixtureOfAdapters.forward and is not implemented.
    """
    params = {"weights": jnp.ones((num_adapters,), jnp.float32), "adapters": []}
    for _ in range(num_adapters):
        k1, k2, key = jax.random.split(key, 3)
        bd = 1.0 / math.sqrt(input_dim)
        bu = 1.0 / math.sqrt(rank)
        down = jax.random.uniform(k1, (rank, input_dim), jnp.float32, -bd, bd)
        up = jax.random.uniform(k2, (output_dim, rank), jnp.float32, -bu, bu)
        params["adapters"].append({"down": down, "up": up})
    return params


if __name__ == "__main__":
    # Shapes consistent with the module: feature_dim = 768 (lane-dense, 6*128),
    # a few adapters, modest token count.  rows = B*S = 2048 -> 4 grid steps
    # of 512 rows each.
    B, S, D = 2, 1024, 768       # batch, seq_len, feature_dim
    A, RANK = 4, 8               # num_adapters, rank

    key = jax.random.PRNGKey(0)
    kx, kg, kp = jax.random.split(key, 3)
    x = jax.random.normal(kx, (B, S, D), jnp.float32)
    gating_scores = jax.nn.softmax(
        jax.random.normal(kg, (B, S, A), jnp.float32), axis=-1
    )

    # Parameters (identity adapters in this forward, as in the reference).
    _ = init_params(kp, D, D, A, RANK)

    out = mixture_of_adapters_forward(x, gating_scores)
    out = jax.block_until_ready(out)

    # Pure-JAX reference of the exact PyTorch semantics: stack identity adapter
    # outputs, weight by permuted gating, sum over adapters.
    adapter_outputs = jnp.stack([x for _ in range(A)], axis=1)     # (B, A, S, D)
    g_exp = jnp.transpose(gating_scores, (0, 2, 1))[..., None]     # (B, A, S, 1)
    ref = jnp.sum(g_exp * adapter_outputs, axis=1)                 # (B, S, D)

    assert out.shape == (B, S, D) and out.dtype == x.dtype
    assert jnp.allclose(out, ref, atol=1e-5, rtol=1e-5)
    print("KERNEL_OK")
</pallas_src>

<mosaic_0001>
module attributes {stable_mosaic.version = 11 : i64} {
  func.func @_moa_kernel(%arg0: i32, %arg1: memref<512x768xf32, #tpu.memory_space<vmem>>, %arg2: memref<512x1xf32, #tpu.memory_space<vmem>>, %arg3: memref<512x768xf32, #tpu.memory_space<vmem>>) attributes {dimension_semantics = [#tpu.dimension_semantics<parallel>], iteration_bounds = array<i64: 4>, scalar_prefetch = 0 : i64, scratch_operands = 0 : i64, tpu.core_type = #tpu.core_type<tc>, window_params = [{transform_indices = @transform_0, window_bounds = array<i64: 512, 768>}, {transform_indices = @transform_1, window_bounds = array<i64: 512, 1>}, {transform_indices = @transform_2, window_bounds = array<i64: 512, 768>}]} {
    %c0 = arith.constant 0 : index
    %c0_0 = arith.constant 0 : index
    %0 = vector.load %arg1[%c0, %c0_0] : memref<512x768xf32, #tpu.memory_space<vmem>>, vector<512x768xf32>
    %c0_1 = arith.constant 0 : index
    %c0_2 = arith.constant 0 : index
    %1 = vector.load %arg2[%c0_1, %c0_2] : memref<512x1xf32, #tpu.memory_space<vmem>>, vector<512x1xf32>
    %2 = vector.broadcast %1 : vector<512x1xf32> to vector<512x768xf32>
    %3 = arith.mulf %0, %2 : vector<512x768xf32>
    %c0_3 = arith.constant 0 : index
    %c0_4 = arith.constant 0 : index
    %4 = vector.load %arg3[%c0_3, %c0_4] : memref<512x768xf32, #tpu.memory_space<vmem>>, vector<512x768xf32>
    tpu.vector_store %arg3[%c0_3, %c0_4], %3 {strides = array<i32>} : memref<512x768xf32, #tpu.memory_space<vmem>>, vector<512x768xf32>,
    return
  }
  func.func @transform_0(%arg0: i32) -> (i32, i32) {
    %c0_i32 = arith.constant 0 : i32
    %c0_i32_0 = arith.constant 0 : i32
    return %arg0, %c0_i32 : i32, i32
  }
  func.func @transform_1(%arg0: i32) -> (i32, i32) {
    %c0_i32 = arith.constant 0 : i32
    %c0_i32_0 = arith.constant 0 : i32
    return %arg0, %c0_i32 : i32, i32
  }
  func.func @transform_2(%arg0: i32) -> (i32, i32) {
    %c0_i32 = arith.constant 0 : i32
    %c0_i32_0 = arith.constant 0 : i32
    return %arg0, %c0_i32 : i32, i32
  }
}

</mosaic_0001>

<llo_original>
// kernel: tpu_custom_call.1
$region0: #{tpu_custom_call.1}
  #allocation0 [shape = 'u32[]', space=smem, size = 0x4, offset = 0x4, fixed_abs, tag = 'smem constant byte address 0x4 - core index']
  #allocation1 [shape = 'u32[144,128]{1,0:T(1,128)}', space=vmem, size = 0x12000, scoped, tag = 'internal scratch']
  %s0 = inlined_call_operand.hbm [shape: f32[2048,768], index: 0, kind: input, shape index: {}]
  %s1 = inlined_call_operand.vmem [shape: f32[2048,1], index: 1, kind: input, shape index: {}]
  %s2 = inlined_call_operand.hbm [shape: f32[2048,768], index: 2, kind: output, shape index: {}]
  %s3 = sld [smem:[#allocation0]]
  $region45: #{tpu_custom_call.1} parent=0
    _
  %s5 = ssub.s32 1, %s3
  %s6 = scalar_select 0, %s5, %s3
  $region1: #{tpu_custom_call.1} parent=0
    #allocation2 [shape = 'u8[3145728]{0}', space=vmem, size = 0x300000, scoped, tag = 'input window, operand 0']
    #allocation3 [shape = 's32[2]{0}', space=sflag, size = 0x8, scoped, tag = 'scoped memory for tpu_custom_call.1']
    #allocation4 [shape = 's32[2]{0}', space=sflag, size = 0x8, scoped, tag = 'scoped memory for tpu_custom_call.1']
    #allocation5 [shape = 'u8[3145728]{0}', space=vmem, size = 0x300000, scoped, tag = 'output window, operand 0']
    %7 = vsyncpa [#allocation3], 0
    %s8 = scalar_lea.sflag [#allocation3], 1
    %9 = vsyncpa %s8, 0
    %10 = vsyncpa [#allocation4], 0
    %s11 = scalar_lea.sflag [#allocation4], 1
    %12 = vsyncpa %s11, 0
    loop: start=0, step=1, limit=6
    $region2: #{tpu_custom_call.1} parent=1 // loop_pre_header
      _
    $region3: #{tpu_custom_call.1} parent=1 // loop_header
      %s14 = sphi 0, %s18
      %p15 = scmp.ge.s32.totalorder %s14, 6
      %s24 = sphi 0, %s26
      %s27 = sphi 0, %s24
      %s28 = sphi 0, %s27
      %s44 = sphi 0, %s28
      %s50 = sphi 0, %s52
      %s53 = sphi 0, %s50
      %s54 = sphi 0, %s53
      %s70 = sphi 0, %s54
      %s76 = sphi 0, %s78
      %s79 = sphi 0, %s76
      %s80 = sphi 0, %s79
      %s96 = sphi 0, %s80
    $region4: #{tpu_custom_call.1} parent=1 // loop_header_branch
      %17 = sbr.rel (%p15) target = $region8
    $region5: #{tpu_custom_call.1} parent=1 // loop_body
      %s19 = ssub.s32 %s14, 1
      %s20 = ssub.s32 %s14, 2
      %s21 = sadd.s32 %s14, 1
      %s22 = ssub.s32 %s14, %s21
      %p23 = scmp.eq.s32.totalorder %s22, 0
      %s25 = sadd.s32 %s24, 1
      %s26 = scalar_select %p23, %s24, %s25
      %p29 = pneg %p23
      %p30 = scmp.eq.s32.totalorder %s14, 3
      %p31 = por %p29, %p30
      %p32 = scmp.ne.s32.totalorder %s24, %s27
      %p33 = scmp.eq.s32.totalorder %s14, 0
      %p34 = por %p32, %p33
      %p35 = scmp.ne.s32.totalorder %s24, %s27
      %p36 = scmp.eq.s32.totalorder %s19, 3
      %p37 = por %p35, %p36
      %p38 = scmp.ne.s32.totalorder %s27, %s28
      %p39 = scmp.eq.s32.totalorder %s19, 0
      %p40 = por %p38, %p39
      %p41 = scmp.ne.s32.totalorder %s27, %s28
      %p42 = scmp.eq.s32.totalorder %s20, 3
      %p43 = por %p41, %p42
      %p45 = scmp.ne.s32.totalorder %s28, %s44
      %p46 = scmp.eq.s32.totalorder %s20, 0
      %p47 = por %p45, %p46
      %s48 = ssub.s32 %s14, %s21
      %p49 = scmp.eq.s32.totalorder %s48, 0
      %s51 = sadd.s32 %s50, 1
      %s52 = scalar_select %p49, %s50, %s51
      %p55 = pneg %p49
      %p56 = scmp.eq.s32.totalorder %s14, 3
      %p57 = por %p55, %p56
      %p58 = scmp.ne.s32.totalorder %s50, %s53
      %p59 = scmp.eq.s32.totalorder %s14, 0
      %p60 = por %p58, %p59
      %p61 = scmp.ne.s32.totalorder %s50, %s53
      %p62 = scmp.eq.s32.totalorder %s19, 3
      %p63 = por %p61, %p62
      %p64 = scmp.ne.s32.totalorder %s53, %s54
      %p65 = scmp.eq.s32.totalorder %s19, 0
      %p66 = por %p64, %p65
      %p67 = scmp.ne.s32.totalorder %s53, %s54
      %p68 = scmp.eq.s32.totalorder %s20, 3
      %p69 = por %p67, %p68
      %p71 = scmp.ne.s32.totalorder %s54, %s70
      %p72 = scmp.eq.s32.totalorder %s20, 0
      %p73 = por %p71, %p72
      %s74 = ssub.s32 %s14, %s21
      %p75 = scmp.eq.s32.totalorder %s74, 0
      %s77 = sadd.s32 %s76, 1
      %s78 = scalar_select %p75, %s76, %s77
      %p81 = pneg %p75
      %p82 = scmp.eq.s32.totalorder %s14, 3
      %p83 = por %p81, %p82
      %p84 = scmp.ne.s32.totalorder %s76, %s79
      %p85 = scmp.eq.s32.totalorder %s14, 0
      %p86 = por %p84, %p85
      %p87 = scmp.ne.s32.totalorder %s76, %s79
      %p88 = scmp.eq.s32.totalorder %s19, 3
      %p89 = por %p87, %p88
      %p90 = scmp.ne.s32.totalorder %s79, %s80
      %p91 = scmp.eq.s32.totalorder %s19, 0
      %p92 = por %p90, %p91
      %p93 = scmp.ne.s32.totalorder %s79, %s80
      %p94 = scmp.eq.s32.totalorder %s20, 3
      %p95 = por %p93, %p94
      %p97 = scmp.ne.s32.totalorder %s80, %s96
      %p98 = scmp.eq.s32.totalorder %s20, 0
      %p99 = por %p97, %p98
      %p100 = scmp.le.s32.totalorder 1, %s14
      %p101 = scmp.lt.s32.totalorder %s14, 5
      %p102 = pnand %p100, %p101
      %p103 = pneg %p102
      // Predicated region
      $region9: #{tpu_custom_call.1} parent=5 // pred_check
        _
      $region10: #{tpu_custom_call.1} parent=5 // pred_check_branch
        %105 = sbr.rel (%p102) target = $region12
      $region11: #{tpu_custom_call.1} parent=5 // pred_region
        %s106 = ssub.s32 %s14, 1
      $region12: #{tpu_custom_call.1} parent=5 // pred_fallthru
        _
      %p107 = scmp.lt.s32.totalorder %s14, 4
      // Predicated region
      $region13: #{tpu_custom_call.1} parent=5 // pred_check
        %p108 = pneg %p107
      $region14: #{tpu_custom_call.1} parent=5 // pred_check_branch
        %110 = sbr.rel (%p108) target = $region16
      $region15: #{tpu_custom_call.1} parent=5 // pred_region
        // Predicated region
        $region17: #{tpu_custom_call.1} parent=15 // pred_check
          %p111 = pneg %p34
        $region18: #{tpu_custom_call.1} parent=15 // pred_check_branch
          %113 = sbr.rel (%p111) target = $region20
        $region19: #{tpu_custom_call.1} parent=15 // pred_region
          %s114 = sand.u32 %s24, 1
          %s115 = scalar_lea.sflag [#allocation3], %s114
          %s116 = sand.u32 %s24, 1
          %s117 = smul.addr %s116, 3072
          %s118 = scalar_lea.vmem [#allocation2], %s117
          %s119 = smul.u32 64, %s14
          %s121 = ssub.s32 49152, 49152
          %122 = vsyncadd %s115, %s121
          %s123 = smul.addr %s119, 6
          %s124 = smul.addr %s123, 128
          %s125 = scalar_lea.hbm %s0, %s124
          %s126 = sshll.u32 %s118, 4
          %s127 = int_to_ptr.vmem [resolvable:$true] %s126
          %132 = dma.hbm_to_vmem [thread:$0]  %s125, 49152, %s127, %s115, 768, 768, 48
        $region20: #{tpu_custom_call.1} parent=15 // pred_fallthru
          _
        // Predicated region
        $region21: #{tpu_custom_call.1} parent=15 // pred_check
          %p133 = pneg %p60
        $region22: #{tpu_custom_call.1} parent=15 // pred_check_branch
          %135 = sbr.rel (%p133) target = $region24
        $region23: #{tpu_custom_call.1} parent=15 // pred_region
          %s136 = smul.u32 64, %s14
          %p137 = scmp.lt.s32.totalorder %s136, 255
          %s138 = scalar_select %p137, %s136, 255
          %s139 = smul.addr %s138, 8
          %s140 = scalar_lea.vmem %s1, %s139
          %s141 = smul.u32 64, %s14
        $region24: #{tpu_custom_call.1} parent=15 // pred_fallthru
          _
      $region16: #{tpu_custom_call.1} parent=5 // pred_fallthru
        _
      %p142 = scmp.le.s32.totalorder 1, %s14
      %p143 = scmp.lt.s32.totalorder %s14, 5
      %p144 = pnand %p142, %p143
      %p145 = pneg %p144
      // Predicated region
      $region25: #{tpu_custom_call.1} parent=5 // pred_check
        _
      $region26: #{tpu_custom_call.1} parent=5 // pred_check_branch
        %147 = sbr.rel (%p144) target = $region28
      $region27: #{tpu_custom_call.1} parent=5 // pred_region
        %s148 = ssub.s32 %s14, 1
        %s149 = sand.u32 %s27, 1
        %s150 = scalar_lea.sflag [#allocation3], %s149
        %s151 = sand.u32 %s27, 1
        %s152 = smul.addr %s151, 3072
        %s153 = scalar_lea.vmem [#allocation2], %s152
        // Predicated region
        $region29: #{tpu_custom_call.1} parent=27 // pred_check
          %p154 = pneg %p40
        $region30: #{tpu_custom_call.1} parent=27 // pred_check_branch
          %156 = sbr.rel (%p154) target = $region32
        $region31: #{tpu_custom_call.1} parent=27 // pred_region
          %157 = dma.done %s150, 49152
        $region32: #{tpu_custom_call.1} parent=27 // pred_fallthru
          _
        %s158 = sand.u32 %s27, 1
        %s159 = scalar_lea.sflag [#allocation3], %s158
        %s160 = sand.u32 %s27, 1
        %s161 = smul.addr %s160, 3072
        %s162 = scalar_lea.vmem [#allocation2], %s161
        %p163 = pneg %p40
        %p164 = pneg %p37
        %s165 = smul.u32 64, %s19
        %p166 = scmp.lt.s32.totalorder %s165, 255
        %s167 = scalar_select %p166, %s165, 255
        %s168 = smul.addr %s167, 8
        %s169 = scalar_lea.vmem %s1, %s168
        %p170 = pneg %p66
        %p171 = pneg %p63
        %p172 = pneg %p92
        %p173 = pneg %p89
        %s174 = sand.u32 %s79, 1
        %s175 = scalar_lea.sflag [#allocation4], %s174
        %s176 = sand.u32 %s79, 1
        %s177 = smul.addr %s176, 3072
        %s178 = scalar_lea.vmem [#allocation5], %s177
        %s179 = smul.u32 64, %s19
        %s180 = smul.u32 64, %s19
        %p181 = scmp.lt.s32.totalorder %s180, 255
        %s182 = scalar_select %p181, %s180, 255
        %s183 = smul.addr %s182, 8
        %s184 = scalar_lea.vmem %s1, %s183
        %s185 = smul.u32 64, %s19
        %s186 = smul.u32 64, %s19
        %v187 = vld [vmem:[%s153] sm:$0xff]
        %v188 = vld [vmem:[%s153 + $0x8] sm:$0xff]
        %v189 = vld [vmem:[%s153 + $0x10] sm:$0xff]
        %v190 = vld [vmem:[%s153 + $0x18] sm:$0xff]
        %v191 = vld [vmem:[%s153 + $0x20] sm:$0xff]
        %v192 = vld [vmem:[%s153 + $0x28] sm:$0xff]
        %v193 = vld [vmem:[%s153 + $0x30] sm:$0xff]
        %v194 = vld [vmem:[%s153 + $0x38] sm:$0xff]
        %v195 = vld [vmem:[%s153 + $0x40] sm:$0xff]
        %v196 = vld [vmem:[%s153 + $0x48] sm:$0xff]
        %v197 = vld [vmem:[%s153 + $0x50] sm:$0xff]
        %v198 = vld [vmem:[%s153 + $0x58] sm:$0xff]
        %v199 = vld [vmem:[%s153 + $0x60] sm:$0xff]
        %v200 = vld [vmem:[%s153 + $0x68] sm:$0xff]
        %v201 = vld [vmem:[%s153 + $0x70] sm:$0xff]
        %v202 = vld [vmem:[%s153 + $0x78] sm:$0xff]
        %v203 = vld [vmem:[%s153 + $0x80] sm:$0xff]
        %v204 = vld [vmem:[%s153 + $0x88] sm:$0xff]
        %v205 = vld [vmem:[%s153 + $0x90] sm:$0xff]
        %v206 = vld [vmem:[%s153 + $0x98] sm:$0xff]
        %v207 = vld [vmem:[%s153 + $0xa0] sm:$0xff]
        %v208 = vld [vmem:[%s153 + $0xa8] sm:$0xff]
        %v209 = vld [vmem:[%s153 + $0xb0] sm:$0xff]
        %v210 = vld [vmem:[%s153 + $0xb8] sm:$0xff]
        %v211 = vld [vmem:[%s153 + $0xc0] sm:$0xff]
        %v212 = vld [vmem:[%s153 + $0xc8] sm:$0xff]
        %v213 = vld [vmem:[%s153 + $0xd0] sm:$0xff]
        %v214 = vld [vmem:[%s153 + $0xd8] sm:$0xff]
        %v215 = vld [vmem:[%s153 + $0xe0] sm:$0xff]
        %v216 = vld [vmem:[%s153 + $0xe8] sm:$0xff]
        %v217 = vld [vmem:[%s153 + $0xf0] sm:$0xff]
        %v218 = vld [vmem:[%s153 + $0xf8] sm:$0xff]
        %v219 = vld [vmem:[%s153 + $0x100] sm:$0xff]
        %v220 = vld [vmem:[%s153 + $0x108] sm:$0xff]
        %v221 = vld [vmem:[%s153 + $0x110] sm:$0xff]
        %v222 = vld [vmem:[%s153 + $0x118] sm:$0xff]
        %v223 = vld [vmem:[%s153 + $0x120] sm:$0xff]
        %v224 = vld [vmem:[%s153 + $0x128] sm:$0xff]
        %v225 = vld [vmem:[%s153 + $0x130] sm:$0xff]
        %v226 = vld [vmem:[%s153 + $0x138] sm:$0xff]
        %v227 = vld [vmem:[%s153 + $0x140] sm:$0xff]
        %v228 = vld [vmem:[%s153 + $0x148] sm:$0xff]
        %v229 = vld [vmem:[%s153 + $0x150] sm:$0xff]
        %v230 = vld [vmem:[%s153 + $0x158] sm:$0xff]
        %v231 = vld [vmem:[%s153 + $0x160] sm:$0xff]
        %v232 = vld [vmem:[%s153 + $0x168] sm:$0xff]
        %v233 = vld [vmem:[%s153 + $0x170] sm:$0xff]
        %v234 = vld [vmem:[%s153 + $0x178] sm:$0xff]
        %v235 = vld [vmem:[%s153 + $0x180] sm:$0xff]
        %v236 = vld [vmem:[%s153 + $0x188] sm:$0xff]
        %v237 = vld [vmem:[%s153 + $0x190] sm:$0xff]
        %v238 = vld [vmem:[%s153 + $0x198] sm:$0xff]
        %v239 = vld [vmem:[%s153 + $0x1a0] sm:$0xff]
        %v240 = vld [vmem:[%s153 + $0x1a8] sm:$0xff]
        %v241 = vld [vmem:[%s153 + $0x1b0] sm:$0xff]
        %v242 = vld [vmem:[%s153 + $0x1b8] sm:$0xff]
        %v243 = vld [vmem:[%s153 + $0x1c0] sm:$0xff]
        %v244 = vld [vmem:[%s153 + $0x1c8] sm:$0xff]
        %v245 = vld [vmem:[%s153 + $0x1d0] sm:$0xff]
        %v246 = vld [vmem:[%s153 + $0x1d8] sm:$0xff]
        %v247 = vld [vmem:[%s153 + $0x1e0] sm:$0xff]
        %v248 = vld [vmem:[%s153 + $0x1e8] sm:$0xff]
        %v249 = vld [vmem:[%s153 + $0x1f0] sm:$0xff]
        %v250 = vld [vmem:[%s153 + $0x1f8] sm:$0xff]
        %v251 = vld [vmem:[%s153 + $0x200] sm:$0xff]
        %v252 = vld [vmem:[%s153 + $0x208] sm:$0xff]
        %v253 = vld [vmem:[%s153 + $0x210] sm:$0xff]
        %v254 = vld [vmem:[%s153 + $0x218] sm:$0xff]
        %v255 = vld [vmem:[%s153 + $0x220] sm:$0xff]
        %v256 = vld [vmem:[%s153 + $0x228] sm:$0xff]
        %v257 = vld [vmem:[%s153 + $0x230] sm:$0xff]
        %v258 = vld [vmem:[%s153 + $0x238] sm:$0xff]
        %v259 = vld [vmem:[%s153 + $0x240] sm:$0xff]
        %v260 = vld [vmem:[%s153 + $0x248] sm:$0xff]
        %v261 = vld [vmem:[%s153 + $0x250] sm:$0xff]
        %v262 = vld [vmem:[%s153 + $0x258] sm:$0xff]
        %v263 = vld [vmem:[%s153 + $0x260] sm:$0xff]
        %v264 = vld [vmem:[%s153 + $0x268] sm:$0xff]
        %v265 = vld [vmem:[%s153 + $0x270] sm:$0xff]
        %v266 = vld [vmem:[%s153 + $0x278] sm:$0xff]
        %v267 = vld [vmem:[%s153 + $0x280] sm:$0xff]
        %v268 = vld [vmem:[%s153 + $0x288] sm:$0xff]
        %v269 = vld [vmem:[%s153 + $0x290] sm:$0xff]
        %v270 = vld [vmem:[%s153 + $0x298] sm:$0xff]
        %v271 = vld [vmem:[%s153 + $0x2a0] sm:$0xff]
        %v272 = vld [vmem:[%s153 + $0x2a8] sm:$0xff]
        %v273 = vld [vmem:[%s153 + $0x2b0] sm:$0xff]
        %v274 = vld [vmem:[%s153 + $0x2b8] sm:$0xff]
        %v275 = vld [vmem:[%s153 + $0x2c0] sm:$0xff]
        %v276 = vld [vmem:[%s153 + $0x2c8] sm:$0xff]
        %v277 = vld [vmem:[%s153 + $0x2d0] sm:$0xff]
        %v278 = vld [vmem:[%s153 + $0x2d8] sm:$0xff]
        %v279 = vld [vmem:[%s153 + $0x2e0] sm:$0xff]
        %v280 = vld [vmem:[%s153 + $0x2e8] sm:$0xff]
        %v281 = vld [vmem:[%s153 + $0x2f0] sm:$0xff]
        %v282 = vld [vmem:[%s153 + $0x2f8] sm:$0xff]
        %v283 = vld [vmem:[%s153 + $0x300] sm:$0xff]
        %v284 = vld [vmem:[%s153 + $0x308] sm:$0xff]
        %v285 = vld [vmem:[%s153 + $0x310] sm:$0xff]
        %v286 = vld [vmem:[%s153 + $0x318] sm:$0xff]
        %v287 = vld [vmem:[%s153 + $0x320] sm:$0xff]
        %v288 = vld [vmem:[%s153 + $0x328] sm:$0xff]
        %v289 = vld [vmem:[%s153 + $0x330] sm:$0xff]
        %v290 = vld [vmem:[%s153 + $0x338] sm:$0xff]
        %v291 = vld [vmem:[%s153 + $0x340] sm:$0xff]
        %v292 = vld [vmem:[%s153 + $0x348] sm:$0xff]
        %v293 = vld [vmem:[%s153 + $0x350] sm:$0xff]
        %v294 = vld [vmem:[%s153 + $0x358] sm:$0xff]
        %v295 = vld [vmem:[%s153 + $0x360] sm:$0xff]
        %v296 = vld [vmem:[%s153 + $0x368] sm:$0xff]
        %v297 = vld [vmem:[%s153 + $0x370] sm:$0xff]
        %v298 = vld [vmem:[%s153 + $0x378] sm:$0xff]
        %v299 = vld [vmem:[%s153 + $0x380] sm:$0xff]
        %v300 = vld [vmem:[%s153 + $0x388] sm:$0xff]
        %v301 = vld [vmem:[%s153 + $0x390] sm:$0xff]
        %v302 = vld [vmem:[%s153 + $0x398] sm:$0xff]
        %v303 = vld [vmem:[%s153 + $0x3a0] sm:$0xff]
        %v304 = vld [vmem:[%s153 + $0x3a8] sm:$0xff]
        %v305 = vld [vmem:[%s153 + $0x3b0] sm:$0xff]
        %v306 = vld [vmem:[%s153 + $0x3b8] sm:$0xff]
        %v307 = vld [vmem:[%s153 + $0x3c0] sm:$0xff]
        %v308 = vld [vmem:[%s153 + $0x3c8] sm:$0xff]
        %v309 = vld [vmem:[%s153 + $0x3d0] sm:$0xff]
        %v310 = vld [vmem:[%s153 + $0x3d8] sm:$0xff]
        %v311 = vld [vmem:[%s153 + $0x3e0] sm:$0xff]
        %v312 = vld [vmem:[%s153 + $0x3e8] sm:$0xff]
        %v313 = vld [vmem:[%s153 + $0x3f0] sm:$0xff]
        %v314 = vld [vmem:[%s153 + $0x3f8] sm:$0xff]
        %v315 = vld [vmem:[%s153 + $0x400] sm:$0xff]
        %v316 = vld [vmem:[%s153 + $0x408] sm:$0xff]
        %v317 = vld [vmem:[%s153 + $0x410] sm:$0xff]
        %v318 = vld [vmem:[%s153 + $0x418] sm:$0xff]
        %v319 = vld [vmem:[%s153 + $0x420] sm:$0xff]
        %v320 = vld [vmem:[%s153 + $0x428] sm:$0xff]
        %v321 = vld [vmem:[%s153 + $0x430] sm:$0xff]
        %v322 = vld [vmem:[%s153 + $0x438] sm:$0xff]
        %v323 = vld [vmem:[%s153 + $0x440] sm:$0xff]
        %v324 = vld [vmem:[%s153 + $0x448] sm:$0xff]
        %v325 = vld [vmem:[%s153 + $0x450] sm:$0xff]
        %v326 = vld [vmem:[%s153 + $0x458] sm:$0xff]
        %v327 = vld [vmem:[%s153 + $0x460] sm:$0xff]
        %v328 = vld [vmem:[%s153 + $0x468] sm:$0xff]
        %v329 = vld [vmem:[%s153 + $0x470] sm:$0xff]
        %v330 = vld [vmem:[%s153 + $0x478] sm:$0xff]
        %v331 = vld [vmem:[%s153 + $0x480] sm:$0xff]
        %v332 = vld [vmem:[%s153 + $0x488] sm:$0xff]
        %v333 = vld [vmem:[%s153 + $0x490] sm:$0xff]
        %v334 = vld [vmem:[%s153 + $0x498] sm:$0xff]
        %v335 = vld [vmem:[%s153 + $0x4a0] sm:$0xff]
        %v336 = vld [vmem:[%s153 + $0x4a8] sm:$0xff]
        %v337 = vld [vmem:[%s153 + $0x4b0] sm:$0xff]
        %v338 = vld [vmem:[%s153 + $0x4b8] sm:$0xff]
        %v339 = vld [vmem:[%s153 + $0x4c0] sm:$0xff]
        %v340 = vld [vmem:[%s153 + $0x4c8] sm:$0xff]
        %v341 = vld [vmem:[%s153 + $0x4d0] sm:$0xff]
        %v342 = vld [vmem:[%s153 + $0x4d8] sm:$0xff]
        %v343 = vld [vmem:[%s153 + $0x4e0] sm:$0xff]
        %v344 = vld [vmem:[%s153 + $0x4e8] sm:$0xff]
        %v345 = vld [vmem:[%s153 + $0x4f0] sm:$0xff]
        %v346 = vld [vmem:[%s153 + $0x4f8] sm:$0xff]
        %v347 = vld [vmem:[%s153 + $0x500] sm:$0xff]
        %v348 = vld [vmem:[%s153 + $0x508] sm:$0xff]
        %v349 = vld [vmem:[%s153 + $0x510] sm:$0xff]
        %v350 = vld [vmem:[%s153 + $0x518] sm:$0xff]
        %v351 = vld [vmem:[%s153 + $0x520] sm:$0xff]
        %v352 = vld [vmem:[%s153 + $0x528] sm:$0xff]
        %v353 = vld [vmem:[%s153 + $0x530] sm:$0xff]
        %v354 = vld [vmem:[%s153 + $0x538] sm:$0xff]
        %v355 = vld [vmem:[%s153 + $0x540] sm:$0xff]
        %v356 = vld [vmem:[%s153 + $0x548] sm:$0xff]
        %v357 = vld [vmem:[%s153 + $0x550] sm:$0xff]
        %v358 = vld [vmem:[%s153 + $0x558] sm:$0xff]
        %v359 = vld [vmem:[%s153 + $0x560] sm:$0xff]
        %v360 = vld [vmem:[%s153 + $0x568] sm:$0xff]
        %v361 = vld [vmem:[%s153 + $0x570] sm:$0xff]
        %v362 = vld [vmem:[%s153 + $0x578] sm:$0xff]
        %v363 = vld [vmem:[%s153 + $0x580] sm:$0xff]
        %v364 = vld [vmem:[%s153 + $0x588] sm:$0xff]
        %v365 = vld [vmem:[%s153 + $0x590] sm:$0xff]
        %v366 = vld [vmem:[%s153 + $0x598] sm:$0xff]
        %v367 = vld [vmem:[%s153 + $0x5a0] sm:$0xff]
        %v368 = vld [vmem:[%s153 + $0x5a8] sm:$0xff]
        %v369 = vld [vmem:[%s153 + $0x5b0] sm:$0xff]
        %v370 = vld [vmem:[%s153 + $0x5b8] sm:$0xff]
        %v371 = vld [vmem:[%s153 + $0x5c0] sm:$0xff]
        %v372 = vld [vmem:[%s153 + $0x5c8] sm:$0xff]
        %v373 = vld [vmem:[%s153 + $0x5d0] sm:$0xff]
        %v374 = vld [vmem:[%s153 + $0x5d8] sm:$0xff]
        %v375 = vld [vmem:[%s153 + $0x5e0] sm:$0xff]
        %v376 = vld [vmem:[%s153 + $0x5e8] sm:$0xff]
        %v377 = vld [vmem:[%s153 + $0x5f0] sm:$0xff]
        %v378 = vld [vmem:[%s153 + $0x5f8] sm:$0xff]
        %v379 = vld [vmem:[%s153 + $0x600] sm:$0xff]
        %v380 = vld [vmem:[%s153 + $0x608] sm:$0xff]
        %v381 = vld [vmem:[%s153 + $0x610] sm:$0xff]
        %v382 = vld [vmem:[%s153 + $0x618] sm:$0xff]
        %v383 = vld [vmem:[%s153 + $0x620] sm:$0xff]
        %v384 = vld [vmem:[%s153 + $0x628] sm:$0xff]
        %v385 = vld [vmem:[%s153 + $0x630] sm:$0xff]
        %v386 = vld [vmem:[%s153 + $0x638] sm:$0xff]
        %v387 = vld [vmem:[%s153 + $0x640] sm:$0xff]
        %v388 = vld [vmem:[%s153 + $0x648] sm:$0xff]
        %v389 = vld [vmem:[%s153 + $0x650] sm:$0xff]
        %v390 = vld [vmem:[%s153 + $0x658] sm:$0xff]
        %v391 = vld [vmem:[%s153 + $0x660] sm:$0xff]
        %v392 = vld [vmem:[%s153 + $0x668] sm:$0xff]
        %v393 = vld [vmem:[%s153 + $0x670] sm:$0xff]
        %v394 = vld [vmem:[%s153 + $0x678] sm:$0xff]
        %v395 = vld [vmem:[%s153 + $0x680] sm:$0xff]
        %v396 = vld [vmem:[%s153 + $0x688] sm:$0xff]
        %v397 = vld [vmem:[%s153 + $0x690] sm:$0xff]
        %v398 = vld [vmem:[%s153 + $0x698] sm:$0xff]
        %v399 = vld [vmem:[%s153 + $0x6a0] sm:$0xff]
        %v400 = vld [vmem:[%s153 + $0x6a8] sm:$0xff]
        %v401 = vld [vmem:[%s153 + $0x6b0] sm:$0xff]
        %v402 = vld [vmem:[%s153 + $0x6b8] sm:$0xff]
        %v403 = vld [vmem:[%s153 + $0x6c0] sm:$0xff]
        %v404 = vld [vmem:[%s153 + $0x6c8] sm:$0xff]
        %v405 = vld [vmem:[%s153 + $0x6d0] sm:$0xff]
        %v406 = vld [vmem:[%s153 + $0x6d8] sm:$0xff]
        %v407 = vld [vmem:[%s153 + $0x6e0] sm:$0xff]
        %v408 = vld [vmem:[%s153 + $0x6e8] sm:$0xff]
        %v409 = vld [vmem:[%s153 + $0x6f0] sm:$0xff]
        %v410 = vld [vmem:[%s153 + $0x6f8] sm:$0xff]
        %v411 = vld [vmem:[%s153 + $0x700] sm:$0xff]
        %v412 = vld [vmem:[%s153 + $0x708] sm:$0xff]
        %v413 = vld [vmem:[%s153 + $0x710] sm:$0xff]
        %v414 = vld [vmem:[%s153 + $0x718] sm:$0xff]
        %v415 = vld [vmem:[%s153 + $0x720] sm:$0xff]
        %v416 = vld [vmem:[%s153 + $0x728] sm:$0xff]
        %v417 = vld [vmem:[%s153 + $0x730] sm:$0xff]
        %v418 = vld [vmem:[%s153 + $0x738] sm:$0xff]
        %v419 = vld [vmem:[%s153 + $0x740] sm:$0xff]
        %v420 = vld [vmem:[%s153 + $0x748] sm:$0xff]
        %v421 = vld [vmem:[%s153 + $0x750] sm:$0xff]
        %v422 = vld [vmem:[%s153 + $0x758] sm:$0xff]
        %v423 = vld [vmem:[%s153 + $0x760] sm:$0xff]
        %v424 = vld [vmem:[%s153 + $0x768] sm:$0xff]
        %v425 = vld [vmem:[%s153 + $0x770] sm:$0xff]
        %v426 = vld [vmem:[%s153 + $0x778] sm:$0xff]
        %v427 = vld [vmem:[%s153 + $0x780] sm:$0xff]
        %v428 = vld [vmem:[%s153 + $0x788] sm:$0xff]
        %v429 = vld [vmem:[%s153 + $0x790] sm:$0xff]
        %v430 = vld [vmem:[%s153 + $0x798] sm:$0xff]
        %v431 = vld [vmem:[%s153 + $0x7a0] sm:$0xff]
        %v432 = vld [vmem:[%s153 + $0x7a8] sm:$0xff]
        %v433 = vld [vmem:[%s153 + $0x7b0] sm:$0xff]
        %v434 = vld [vmem:[%s153 + $0x7b8] sm:$0xff]
        %v435 = vld [vmem:[%s153 + $0x7c0] sm:$0xff]
        %v436 = vld [vmem:[%s153 + $0x7c8] sm:$0xff]
        %v437 = vld [vmem:[%s153 + $0x7d0] sm:$0xff]
        %v438 = vld [vmem:[%s153 + $0x7d8] sm:$0xff]
        %v439 = vld [vmem:[%s153 + $0x7e0] sm:$0xff]
        %v440 = vld [vmem:[%s153 + $0x7e8] sm:$0xff]
        %v441 = vld [vmem:[%s153 + $0x7f0] sm:$0xff]
        %v442 = vld [vmem:[%s153 + $0x7f8] sm:$0xff]
        %v443 = vld [vmem:[%s153 + $0x800] sm:$0xff]
        %v444 = vld [vmem:[%s153 + $0x808] sm:$0xff]
        %v445 = vld [vmem:[%s153 + $0x810] sm:$0xff]
        %v446 = vld [vmem:[%s153 + $0x818] sm:$0xff]
        %v447 = vld [vmem:[%s153 + $0x820] sm:$0xff]
        %v448 = vld [vmem:[%s153 + $0x828] sm:$0xff]
        %v449 = vld [vmem:[%s153 + $0x830] sm:$0xff]
        %v450 = vld [vmem:[%s153 + $0x838] sm:$0xff]
        %v451 = vld [vmem:[%s153 + $0x840] sm:$0xff]
        %v452 = vld [vmem:[%s153 + $0x848] sm:$0xff]
        %v453 = vld [vmem:[%s153 + $0x850] sm:$0xff]
        %v454 = vld [vmem:[%s153 + $0x858] sm:$0xff]
        %v455 = vld [vmem:[%s153 + $0x860] sm:$0xff]
        %v456 = vld [vmem:[%s153 + $0x868] sm:$0xff]
        %v457 = vld [vmem:[%s153 + $0x870] sm:$0xff]
        %v458 = vld [vmem:[%s153 + $0x878] sm:$0xff]
        %v459 = vld [vmem:[%s153 + $0x880] sm:$0xff]
        %v460 = vld [vmem:[%s153 + $0x888] sm:$0xff]
        %v461 = vld [vmem:[%s153 + $0x890] sm:$0xff]
        %v462 = vld [vmem:[%s153 + $0x898] sm:$0xff]
        %v463 = vld [vmem:[%s153 + $0x8a0] sm:$0xff]
        %v464 = vld [vmem:[%s153 + $0x8a8] sm:$0xff]
        %v465 = vld [vmem:[%s153 + $0x8b0] sm:$0xff]
        %v466 = vld [vmem:[%s153 + $0x8b8] sm:$0xff]
        %v467 = vld [vmem:[%s153 + $0x8c0] sm:$0xff]
        %v468 = vld [vmem:[%s153 + $0x8c8] sm:$0xff]
        %v469 = vld [vmem:[%s153 + $0x8d0] sm:$0xff]
        %v470 = vld [vmem:[%s153 + $0x8d8] sm:$0xff]
        %v471 = vld [vmem:[%s153 + $0x8e0] sm:$0xff]
        %v472 = vld [vmem:[%s153 + $0x8e8] sm:$0xff]
        %v473 = vld [vmem:[%s153 + $0x8f0] sm:$0xff]
        %v474 = vld [vmem:[%s153 + $0x8f8] sm:$0xff]
        %v475 = vld [vmem:[%s153 + $0x900] sm:$0xff]
        %v476 = vld [vmem:[%s153 + $0x908] sm:$0xff]
        %v477 = vld [vmem:[%s153 + $0x910] sm:$0xff]
        %v478 = vld [vmem:[%s153 + $0x918] sm:$0xff]
        %v479 = vld [vmem:[%s153 + $0x920] sm:$0xff]
        %v480 = vld [vmem:[%s153 + $0x928] sm:$0xff]
        %v481 = vld [vmem:[%s153 + $0x930] sm:$0xff]
        %v482 = vld [vmem:[%s153 + $0x938] sm:$0xff]
        %v483 = vld [vmem:[%s153 + $0x940] sm:$0xff]
        %v484 = vld [vmem:[%s153 + $0x948] sm:$0xff]
        %v485 = vld [vmem:[%s153 + $0x950] sm:$0xff]
        %v486 = vld [vmem:[%s153 + $0x958] sm:$0xff]
        %v487 = vld [vmem:[%s153 + $0x960] sm:$0xff]
        %v488 = vld [vmem:[%s153 + $0x968] sm:$0xff]
        %v489 = vld [vmem:[%s153 + $0x970] sm:$0xff]
        %v490 = vld [vmem:[%s153 + $0x978] sm:$0xff]
        %v491 = vld [vmem:[%s153 + $0x980] sm:$0xff]
        %v492 = vld [vmem:[%s153 + $0x988] sm:$0xff]
        %v493 = vld [vmem:[%s153 + $0x990] sm:$0xff]
        %v494 = vld [vmem:[%s153 + $0x998] sm:$0xff]
        %v495 = vld [vmem:[%s153 + $0x9a0] sm:$0xff]
        %v496 = vld [vmem:[%s153 + $0x9a8] sm:$0xff]
        %v497 = vld [vmem:[%s153 + $0x9b0] sm:$0xff]
        %v498 = vld [vmem:[%s153 + $0x9b8] sm:$0xff]
        %v499 = vld [vmem:[%s153 + $0x9c0] sm:$0xff]
        %v500 = vld [vmem:[%s153 + $0x9c8] sm:$0xff]
        %v501 = vld [vmem:[%s153 + $0x9d0] sm:$0xff]
        %v502 = vld [vmem:[%s153 + $0x9d8] sm:$0xff]
        %v503 = vld [vmem:[%s153 + $0x9e0] sm:$0xff]
        %v504 = vld [vmem:[%s153 + $0x9e8] sm:$0xff]
        %v505 = vld [vmem:[%s153 + $0x9f0] sm:$0xff]
        %v506 = vld [vmem:[%s153 + $0x9f8] sm:$0xff]
        %v507 = vld [vmem:[%s153 + $0xa00] sm:$0xff]
        %v508 = vld [vmem:[%s153 + $0xa08] sm:$0xff]
        %v509 = vld [vmem:[%s153 + $0xa10] sm:$0xff]
        %v510 = vld [vmem:[%s153 + $0xa18] sm:$0xff]
        %v511 = vld [vmem:[%s153 + $0xa20] sm:$0xff]
        %v512 = vld [vmem:[%s153 + $0xa28] sm:$0xff]
        %v513 = vld [vmem:[%s153 + $0xa30] sm:$0xff]
        %v514 = vld [vmem:[%s153 + $0xa38] sm:$0xff]
        %v515 = vld [vmem:[%s153 + $0xa40] sm:$0xff]
        %v516 = vld [vmem:[%s153 + $0xa48] sm:$0xff]
        %v517 = vld [vmem:[%s153 + $0xa50] sm:$0xff]
        %v518 = vld [vmem:[%s153 + $0xa58] sm:$0xff]
        %v519 = vld [vmem:[%s153 + $0xa60] sm:$0xff]
        %v520 = vld [vmem:[%s153 + $0xa68] sm:$0xff]
        %v521 = vld [vmem:[%s153 + $0xa70] sm:$0xff]
        %v522 = vld [vmem:[%s153 + $0xa78] sm:$0xff]
        %v523 = vld [vmem:[%s153 + $0xa80] sm:$0xff]
        %v524 = vld [vmem:[%s153 + $0xa88] sm:$0xff]
        %v525 = vld [vmem:[%s153 + $0xa90] sm:$0xff]
        %v526 = vld [vmem:[%s153 + $0xa98] sm:$0xff]
        %v527 = vld [vmem:[%s153 + $0xaa0] sm:$0xff]
        %v528 = vld [vmem:[%s153 + $0xaa8] sm:$0xff]
        %v529 = vld [vmem:[%s153 + $0xab0] sm:$0xff]
        %v530 = vld [vmem:[%s153 + $0xab8] sm:$0xff]
        %v531 = vld [vmem:[%s153 + $0xac0] sm:$0xff]
        %v532 = vld [vmem:[%s153 + $0xac8] sm:$0xff]
        %v533 = vld [vmem:[%s153 + $0xad0] sm:$0xff]
        %v534 = vld [vmem:[%s153 + $0xad8] sm:$0xff]
        %v535 = vld [vmem:[%s153 + $0xae0] sm:$0xff]
        %v536 = vld [vmem:[%s153 + $0xae8] sm:$0xff]
        %v537 = vld [vmem:[%s153 + $0xaf0] sm:$0xff]
        %v538 = vld [vmem:[%s153 + $0xaf8] sm:$0xff]
        %v539 = vld [vmem:[%s153 + $0xb00] sm:$0xff]
        %v540 = vld [vmem:[%s153 + $0xb08] sm:$0xff]
        %v541 = vld [vmem:[%s153 + $0xb10] sm:$0xff]
        %v542 = vld [vmem:[%s153 + $0xb18] sm:$0xff]
        %v543 = vld [vmem:[%s153 + $0xb20] sm:$0xff]
        %v544 = vld [vmem:[%s153 + $0xb28] sm:$0xff]
        %v545 = vld [vmem:[%s153 + $0xb30] sm:$0xff]
        %v546 = vld [vmem:[%s153 + $0xb38] sm:$0xff]
        %v547 = vld [vmem:[%s153 + $0xb40] sm:$0xff]
        %v548 = vld [vmem:[%s153 + $0xb48] sm:$0xff]
        %v549 = vld [vmem:[%s153 + $0xb50] sm:$0xff]
        %v550 = vld [vmem:[%s153 + $0xb58] sm:$0xff]
        %v551 = vld [vmem:[%s153 + $0xb60] sm:$0xff]
        %v552 = vld [vmem:[%s153 + $0xb68] sm:$0xff]
        %v553 = vld [vmem:[%s153 + $0xb70] sm:$0xff]
        %v554 = vld [vmem:[%s153 + $0xb78] sm:$0xff]
        %v555 = vld [vmem:[%s153 + $0xb80] sm:$0xff]
        %v556 = vld [vmem:[%s153 + $0xb88] sm:$0xff]
        %v557 = vld [vmem:[%s153 + $0xb90] sm:$0xff]
        %v558 = vld [vmem:[%s153 + $0xb98] sm:$0xff]
        %v559 = vld [vmem:[%s153 + $0xba0] sm:$0xff]
        %v560 = vld [vmem:[%s153 + $0xba8] sm:$0xff]
        %v561 = vld [vmem:[%s153 + $0xbb0] sm:$0xff]
        %v562 = vld [vmem:[%s153 + $0xbb8] sm:$0xff]
        %v563 = vld [vmem:[%s153 + $0xbc0] sm:$0xff]
        %v564 = vld [vmem:[%s153 + $0xbc8] sm:$0xff]
        %v565 = vld [vmem:[%s153 + $0xbd0] sm:$0xff]
        %v566 = vld [vmem:[%s153 + $0xbd8] sm:$0xff]
        %v567 = vld [vmem:[%s153 + $0xbe0] sm:$0xff]
        %v568 = vld [vmem:[%s153 + $0xbe8] sm:$0xff]
        %v569 = vld [vmem:[%s153 + $0xbf0] sm:$0xff]
        %v570 = vld [vmem:[%s153 + $0xbf8] sm:$0xff]
        %v571 = vld [vmem:[%s184] sm:$0xff]
        %v572 = vld [vmem:[%s184 + $0x8] sm:$0xff]
        %v573 = vld [vmem:[%s184 + $0x10] sm:$0xff]
        %v574 = vld [vmem:[%s184 + $0x18] sm:$0xff]
        %v575 = vld [vmem:[%s184 + $0x20] sm:$0xff]
        %v576 = vld [vmem:[%s184 + $0x28] sm:$0xff]
        %v577 = vld [vmem:[%s184 + $0x30] sm:$0xff]
        %v578 = vld [vmem:[%s184 + $0x38] sm:$0xff]
        %v579 = vld [vmem:[%s184 + $0x40] sm:$0xff]
        %v580 = vld [vmem:[%s184 + $0x48] sm:$0xff]
        %v581 = vld [vmem:[%s184 + $0x50] sm:$0xff]
        %v582 = vld [vmem:[%s184 + $0x58] sm:$0xff]
        %v583 = vld [vmem:[%s184 + $0x60] sm:$0xff]
        %v584 = vld [vmem:[%s184 + $0x68] sm:$0xff]
        %v585 = vld [vmem:[%s184 + $0x70] sm:$0xff]
        %v586 = vld [vmem:[%s184 + $0x78] sm:$0xff]
        %v587 = vld [vmem:[%s184 + $0x80] sm:$0xff]
        %v588 = vld [vmem:[%s184 + $0x88] sm:$0xff]
        %v589 = vld [vmem:[%s184 + $0x90] sm:$0xff]
        %v590 = vld [vmem:[%s184 + $0x98] sm:$0xff]
        %v591 = vld [vmem:[%s184 + $0xa0] sm:$0xff]
        %v592 = vld [vmem:[%s184 + $0xa8] sm:$0xff]
        %v593 = vld [vmem:[%s184 + $0xb0] sm:$0xff]
        %v594 = vld [vmem:[%s184 + $0xb8] sm:$0xff]
        %v595 = vld [vmem:[%s184 + $0xc0] sm:$0xff]
        %v596 = vld [vmem:[%s184 + $0xc8] sm:$0xff]
        %v597 = vld [vmem:[%s184 + $0xd0] sm:$0xff]
        %v598 = vld [vmem:[%s184 + $0xd8] sm:$0xff]
        %v599 = vld [vmem:[%s184 + $0xe0] sm:$0xff]
        %v600 = vld [vmem:[%s184 + $0xe8] sm:$0xff]
        %v601 = vld [vmem:[%s184 + $0xf0] sm:$0xff]
        %v602 = vld [vmem:[%s184 + $0xf8] sm:$0xff]
        %v603 = vld [vmem:[%s184 + $0x100] sm:$0xff]
        %v604 = vld [vmem:[%s184 + $0x108] sm:$0xff]
        %v605 = vld [vmem:[%s184 + $0x110] sm:$0xff]
        %v606 = vld [vmem:[%s184 + $0x118] sm:$0xff]
        %v607 = vld [vmem:[%s184 + $0x120] sm:$0xff]
        %v608 = vld [vmem:[%s184 + $0x128] sm:$0xff]
        %v609 = vld [vmem:[%s184 + $0x130] sm:$0xff]
        %v610 = vld [vmem:[%s184 + $0x138] sm:$0xff]
        %v611 = vld [vmem:[%s184 + $0x140] sm:$0xff]
        %v612 = vld [vmem:[%s184 + $0x148] sm:$0xff]
        %v613 = vld [vmem:[%s184 + $0x150] sm:$0xff]
        %v614 = vld [vmem:[%s184 + $0x158] sm:$0xff]
        %v615 = vld [vmem:[%s184 + $0x160] sm:$0xff]
        %v616 = vld [vmem:[%s184 + $0x168] sm:$0xff]
        %v617 = vld [vmem:[%s184 + $0x170] sm:$0xff]
        %v618 = vld [vmem:[%s184 + $0x178] sm:$0xff]
        %v619 = vld [vmem:[%s184 + $0x180] sm:$0xff]
        %v620 = vld [vmem:[%s184 + $0x188] sm:$0xff]
        %v621 = vld [vmem:[%s184 + $0x190] sm:$0xff]
        %v622 = vld [vmem:[%s184 + $0x198] sm:$0xff]
        %v623 = vld [vmem:[%s184 + $0x1a0] sm:$0xff]
        %v624 = vld [vmem:[%s184 + $0x1a8] sm:$0xff]
        %v625 = vld [vmem:[%s184 + $0x1b0] sm:$0xff]
        %v626 = vld [vmem:[%s184 + $0x1b8] sm:$0xff]
        %v627 = vld [vmem:[%s184 + $0x1c0] sm:$0xff]
        %v628 = vld [vmem:[%s184 + $0x1c8] sm:$0xff]
        %v629 = vld [vmem:[%s184 + $0x1d0] sm:$0xff]
        %v630 = vld [vmem:[%s184 + $0x1d8] sm:$0xff]
        %v631 = vld [vmem:[%s184 + $0x1e0] sm:$0xff]
        %v632 = vld [vmem:[%s184 + $0x1e8] sm:$0xff]
        %v633 = vld [vmem:[%s184 + $0x1f0] sm:$0xff]
        %v634 = vld [vmem:[%s184 + $0x1f8] sm:$0xff]
        %636 = vset.pattern.permute.xlu0 0
        %637 = vperm.xlu0 %636, %v571
        %v638 = vpop.permute.xlu0 %637
        %641 = vset.pattern.permute.xlu0 0
        %642 = vperm.xlu0 %641, %v572
        %v643 = vpop.permute.xlu0 %642
        %646 = vset.pattern.permute.xlu0 0
        %647 = vperm.xlu0 %646, %v573
        %v648 = vpop.permute.xlu0 %647
        %651 = vset.pattern.permute.xlu0 0
        %652 = vperm.xlu0 %651, %v574
        %v653 = vpop.permute.xlu0 %652
        %656 = vset.pattern.permute.xlu0 0
        %657 = vperm.xlu0 %656, %v575
        %v658 = vpop.permute.xlu0 %657
        %661 = vset.pattern.permute.xlu0 0
        %662 = vperm.xlu0 %661, %v576
        %v663 = vpop.permute.xlu0 %662
        %666 = vset.pattern.permute.xlu0 0
        %667 = vperm.xlu0 %666, %v577
        %v668 = vpop.permute.xlu0 %667
        %671 = vset.pattern.permute.xlu0 0
        %672 = vperm.xlu0 %671, %v578
        %v673 = vpop.permute.xlu0 %672
        %676 = vset.pattern.permute.xlu0 0
        %677 = vperm.xlu0 %676, %v579
        %v678 = vpop.permute.xlu0 %677
        %681 = vset.pattern.permute.xlu0 0
        %682 = vperm.xlu0 %681, %v580
        %v683 = vpop.permute.xlu0 %682
        %686 = vset.pattern.permute.xlu0 0
        %687 = vperm.xlu0 %686, %v581
        %v688 = vpop.permute.xlu0 %687
        %691 = vset.pattern.permute.xlu0 0
        %692 = vperm.xlu0 %691, %v582
        %v693 = vpop.permute.xlu0 %692
        %696 = vset.pattern.permute.xlu0 0
        %697 = vperm.xlu0 %696, %v583
        %v698 = vpop.permute.xlu0 %697
        %701 = vset.pattern.permute.xlu0 0
        %702 = vperm.xlu0 %701, %v584
        %v703 = vpop.permute.xlu0 %702
        %706 = vset.pattern.permute.xlu0 0
        %707 = vperm.xlu0 %706, %v585
        %v708 = vpop.permute.xlu0 %707
        %711 = vset.pattern.permute.xlu0 0
        %712 = vperm.xlu0 %711, %v586
        %v713 = vpop.permute.xlu0 %712
        %716 = vset.pattern.permute.xlu0 0
        %717 = vperm.xlu0 %716, %v587
        %v718 = vpop.permute.xlu0 %717
        %721 = vset.pattern.permute.xlu0 0
        %722 = vperm.xlu0 %721, %v588
        %v723 = vpop.permute.xlu0 %722
        %726 = vset.pattern.permute.xlu0 0
        %727 = vperm.xlu0 %726, %v589
        %v728 = vpop.permute.xlu0 %727
        %731 = vset.pattern.permute.xlu0 0
        %732 = vperm.xlu0 %731, %v590
        %v733 = vpop.permute.xlu0 %732
        %736 = vset.pattern.permute.xlu0 0
        %737 = vperm.xlu0 %736, %v591
        %v738 = vpop.permute.xlu0 %737
        %741 = vset.pattern.permute.xlu0 0
        %742 = vperm.xlu0 %741, %v592
        %v743 = vpop.permute.xlu0 %742
        %746 = vset.pattern.permute.xlu0 0
        %747 = vperm.xlu0 %746, %v593
        %v748 = vpop.permute.xlu0 %747
        %751 = vset.pattern.permute.xlu0 0
        %752 = vperm.xlu0 %751, %v594
        %v753 = vpop.permute.xlu0 %752
        %756 = vset.pattern.permute.xlu0 0
        %757 = vperm.xlu0 %756, %v595
        %v758 = vpop.permute.xlu0 %757
        %761 = vset.pattern.permute.xlu0 0
        %762 = vperm.xlu0 %761, %v596
        %v763 = vpop.permute.xlu0 %762
        %766 = vset.pattern.permute.xlu0 0
        %767 = vperm.xlu0 %766, %v597
        %v768 = vpop.permute.xlu0 %767
        %771 = vset.pattern.permute.xlu0 0
        %772 = vperm.xlu0 %771, %v598
        %v773 = vpop.permute.xlu0 %772
        %776 = vset.pattern.permute.xlu0 0
        %777 = vperm.xlu0 %776, %v599
        %v778 = vpop.permute.xlu0 %777
        %781 = vset.pattern.permute.xlu0 0
        %782 = vperm.xlu0 %781, %v600
        %v783 = vpop.permute.xlu0 %782
        %786 = vset.pattern.permute.xlu0 0
        %787 = vperm.xlu0 %786, %v601
        %v788 = vpop.permute.xlu0 %787
        %791 = vset.pattern.permute.xlu0 0
        %792 = vperm.xlu0 %791, %v602
        %v793 = vpop.permute.xlu0 %792
        %796 = vset.pattern.permute.xlu0 0
        %797 = vperm.xlu0 %796, %v603
        %v798 = vpop.permute.xlu0 %797
        %801 = vset.pattern.permute.xlu0 0
        %802 = vperm.xlu0 %801, %v604
        %v803 = vpop.permute.xlu0 %802
        %806 = vset.pattern.permute.xlu0 0
        %807 = vperm.xlu0 %806, %v605
        %v808 = vpop.permute.xlu0 %807
        %811 = vset.pattern.permute.xlu0 0
        %812 = vperm.xlu0 %811, %v606
        %v813 = vpop.permute.xlu0 %812
        %816 = vset.pattern.permute.xlu0 0
        %817 = vperm.xlu0 %816, %v607
        %v818 = vpop.permute.xlu0 %817
        %821 = vset.pattern.permute.xlu0 0
        %822 = vperm.xlu0 %821, %v608
        %v823 = vpop.permute.xlu0 %822
        %826 = vset.pattern.permute.xlu0 0
        %827 = vperm.xlu0 %826, %v609
        %v828 = vpop.permute.xlu0 %827
        %831 = vset.pattern.permute.xlu0 0
        %832 = vperm.xlu0 %831, %v610
        %v833 = vpop.permute.xlu0 %832
        %836 = vset.pattern.permute.xlu0 0
        %837 = vperm.xlu0 %836, %v611
        %v838 = vpop.permute.xlu0 %837
        %841 = vset.pattern.permute.xlu0 0
        %842 = vperm.xlu0 %841, %v612
        %v843 = vpop.permute.xlu0 %842
        %846 = vset.pattern.permute.xlu0 0
        %847 = vperm.xlu0 %846, %v613
        %v848 = vpop.permute.xlu0 %847
        %851 = vset.pattern.permute.xlu0 0
        %852 = vperm.xlu0 %851, %v614
        %v853 = vpop.permute.xlu0 %852
        %856 = vset.pattern.permute.xlu0 0
        %857 = vperm.xlu0 %856, %v615
        %v858 = vpop.permute.xlu0 %857
        %861 = vset.pattern.permute.xlu0 0
        %862 = vperm.xlu0 %861, %v616
        %v863 = vpop.permute.xlu0 %862
        %866 = vset.pattern.permute.xlu0 0
        %867 = vperm.xlu0 %866, %v617
        %v868 = vpop.permute.xlu0 %867
        %871 = vset.pattern.permute.xlu0 0
        %872 = vperm.xlu0 %871, %v618
        %v873 = vpop.permute.xlu0 %872
        %876 = vset.pattern.permute.xlu0 0
        %877 = vperm.xlu0 %876, %v619
        %v878 = vpop.permute.xlu0 %877
        %881 = vset.pattern.permute.xlu0 0
        %882 = vperm.xlu0 %881, %v620
        %v883 = vpop.permute.xlu0 %882
        %886 = vset.pattern.permute.xlu0 0
        %887 = vperm.xlu0 %886, %v621
        %v888 = vpop.permute.xlu0 %887
        %891 = vset.pattern.permute.xlu0 0
        %892 = vperm.xlu0 %891, %v622
        %v893 = vpop.permute.xlu0 %892
        %896 = vset.pattern.permute.xlu0 0
        %897 = vperm.xlu0 %896, %v623
        %v898 = vpop.permute.xlu0 %897
        %901 = vset.pattern.permute.xlu0 0
        %902 = vperm.xlu0 %901, %v624
        %v903 = vpop.permute.xlu0 %902
        %906 = vset.pattern.permute.xlu0 0
        %907 = vperm.xlu0 %906, %v625
        %v908 = vpop.permute.xlu0 %907
        %911 = vset.pattern.permute.xlu0 0
        %912 = vperm.xlu0 %911, %v626
        %v913 = vpop.permute.xlu0 %912
        %916 = vset.pattern.permute.xlu0 0
        %917 = vperm.xlu0 %916, %v627
        %v918 = vpop.permute.xlu0 %917
        %921 = vset.pattern.permute.xlu0 0
        %922 = vperm.xlu0 %921, %v628
        %v923 = vpop.permute.xlu0 %922
        %926 = vset.pattern.permute.xlu0 0
        %927 = vperm.xlu0 %926, %v629
        %v928 = vpop.permute.xlu0 %927
        %931 = vset.pattern.permute.xlu0 0
        %932 = vperm.xlu0 %931, %v630
        %v933 = vpop.permute.xlu0 %932
        %936 = vset.pattern.permute.xlu0 0
        %937 = vperm.xlu0 %936, %v631
        %v938 = vpop.permute.xlu0 %937
        %941 = vset.pattern.permute.xlu0 0
        %942 = vperm.xlu0 %941, %v632
        %v943 = vpop.permute.xlu0 %942
        %946 = vset.pattern.permute.xlu0 0
        %947 = vperm.xlu0 %946, %v633
        %v948 = vpop.permute.xlu0 %947
        %951 = vset.pattern.permute.xlu0 0
        %952 = vperm.xlu0 %951, %v634
        %v953 = vpop.permute.xlu0 %952
        %v955 = vmul.f32 %v187, %v638
        %v956 = vmul.f32 %v188, %v638
        %v957 = vmul.f32 %v189, %v638
        %v958 = vmul.f32 %v190, %v638
        %v959 = vmul.f32 %v191, %v638
        %v960 = vmul.f32 %v192, %v638
        %v961 = vmul.f32 %v193, %v643
        %v962 = vmul.f32 %v194, %v643
        %v963 = vmul.f32 %v195, %v643
        %v964 = vmul.f32 %v196, %v643
        %v965 = vmul.f32 %v197, %v643
        %v966 = vmul.f32 %v198, %v643
        %v967 = vmul.f32 %v199, %v648
        %v968 = vmul.f32 %v200, %v648
        %v969 = vmul.f32 %v201, %v648
        %v970 = vmul.f32 %v202, %v648
        %v971 = vmul.f32 %v203, %v648
        %v972 = vmul.f32 %v204, %v648
        %v973 = vmul.f32 %v205, %v653
        %v974 = vmul.f32 %v206, %v653
        %v975 = vmul.f32 %v207, %v653
        %v976 = vmul.f32 %v208, %v653
        %v977 = vmul.f32 %v209, %v653
        %v978 = vmul.f32 %v210, %v653
        %v979 = vmul.f32 %v211, %v658
        %v980 = vmul.f32 %v212, %v658
        %v981 = vmul.f32 %v213, %v658
        %v982 = vmul.f32 %v214, %v658
        %v983 = vmul.f32 %v215, %v658
        %v984 = vmul.f32 %v216, %v658
        %v985 = vmul.f32 %v217, %v663
        %v986 = vmul.f32 %v218, %v663
        %v987 = vmul.f32 %v219, %v663
        %v988 = vmul.f32 %v220, %v663
        %v989 = vmul.f32 %v221, %v663
        %v990 = vmul.f32 %v222, %v663
        %v991 = vmul.f32 %v223, %v668
        %v992 = vmul.f32 %v224, %v668
        %v993 = vmul.f32 %v225, %v668
        %v994 = vmul.f32 %v226, %v668
        %v995 = vmul.f32 %v227, %v668
        %v996 = vmul.f32 %v228, %v668
        %v997 = vmul.f32 %v229, %v673
        %v998 = vmul.f32 %v230, %v673
        %v999 = vmul.f32 %v231, %v673
        %v1000 = vmul.f32 %v232, %v673
        %v1001 = vmul.f32 %v233, %v673
        %v1002 = vmul.f32 %v234, %v673
        %v1003 = vmul.f32 %v235, %v678
        %v1004 = vmul.f32 %v236, %v678
        %v1005 = vmul.f32 %v237, %v678
        %v1006 = vmul.f32 %v238, %v678
        %v1007 = vmul.f32 %v239, %v678
        %v1008 = vmul.f32 %v240, %v678
        %v1009 = vmul.f32 %v241, %v683
        %v1010 = vmul.f32 %v242, %v683
        %v1011 = vmul.f32 %v243, %v683
        %v1012 = vmul.f32 %v244, %v683
        %v1013 = vmul.f32 %v245, %v683
        %v1014 = vmul.f32 %v246, %v683
        %v1015 = vmul.f32 %v247, %v688
        %v1016 = vmul.f32 %v248, %v688
        %v1017 = vmul.f32 %v249, %v688
        %v1018 = vmul.f32 %v250, %v688
        %v1019 = vmul.f32 %v251, %v688
        %v1020 = vmul.f32 %v252, %v688
        %v1021 = vmul.f32 %v253, %v693
        %v1022 = vmul.f32 %v254, %v693
        %v1023 = vmul.f32 %v255, %v693
        %v1024 = vmul.f32 %v256, %v693
        %v1025 = vmul.f32 %v257, %v693
        %v1026 = vmul.f32 %v258, %v693
        %v1027 = vmul.f32 %v259, %v698
        %v1028 = vmul.f32 %v260, %v698
        %v1029 = vmul.f32 %v261, %v698
        %v1030 = vmul.f32 %v262, %v698
        %v1031 = vmul.f32 %v263, %v698
        %v1032 = vmul.f32 %v264, %v698
        %v1033 = vmul.f32 %v265, %v703
        %v1034 = vmul.f32 %v266, %v703
        %v1035 = vmul.f32 %v267, %v703
        %v1036 = vmul.f32 %v268, %v703
        %v1037 = vmul.f32 %v269, %v703
        %v1038 = vmul.f32 %v270, %v703
        %v1039 = vmul.f32 %v271, %v708
        %v1040 = vmul.f32 %v272, %v708
        %v1041 = vmul.f32 %v273, %v708
        %v1042 = vmul.f32 %v274, %v708
        %v1043 = vmul.f32 %v275, %v708
        %v1044 = vmul.f32 %v276, %v708
        %v1045 = vmul.f32 %v277, %v713
        %v1046 = vmul.f32 %v278, %v713
        %v1047 = vmul.f32 %v279, %v713
        %v1048 = vmul.f32 %v280, %v713
        %v1049 = vmul.f32 %v281, %v713
        %v1050 = vmul.f32 %v282, %v713
        %v1051 = vmul.f32 %v283, %v718
        %v1052 = vmul.f32 %v284, %v718
        %v1053 = vmul.f32 %v285, %v718
        %v1054 = vmul.f32 %v286, %v718
        %v1055 = vmul.f32 %v287, %v718
        %v1056 = vmul.f32 %v288, %v718
        %v1057 = vmul.f32 %v289, %v723
        %v1058 = vmul.f32 %v290, %v723
        %v1059 = vmul.f32 %v291, %v723
        %v1060 = vmul.f32 %v292, %v723
        %v1061 = vmul.f32 %v293, %v723
        %v1062 = vmul.f32 %v294, %v723
        %v1063 = vmul.f32 %v295, %v728
        %v1064 = vmul.f32 %v296, %v728
        %v1065 = vmul.f32 %v297, %v728
        %v1066 = vmul.f32 %v298, %v728
        %v1067 = vmul.f32 %v299, %v728
        %v1068 = vmul.f32 %v300, %v728
        %v1069 = vmul.f32 %v301, %v733
        %v1070 = vmul.f32 %v302, %v733
        %v1071 = vmul.f32 %v303, %v733
        %v1072 = vmul.f32 %v304, %v733
        %v1073 = vmul.f32 %v305, %v733
        %v1074 = vmul.f32 %v306, %v733
        %v1075 = vmul.f32 %v307, %v738
        %v1076 = vmul.f32 %v308, %v738
        %v1077 = vmul.f32 %v309, %v738
        %v1078 = vmul.f32 %v310, %v738
        %v1079 = vmul.f32 %v311, %v738
        %v1080 = vmul.f32 %v312, %v738
        %v1081 = vmul.f32 %v313, %v743
        %v1082 = vmul.f32 %v314, %v743
        %v1083 = vmul.f32 %v315, %v743
        %v1084 = vmul.f32 %v316, %v743
        %v1085 = vmul.f32 %v317, %v743
        %v1086 = vmul.f32 %v318, %v743
        %v1087 = vmul.f32 %v319, %v748
        %v1088 = vmul.f32 %v320, %v748
        %v1089 = vmul.f32 %v321, %v748
        %v1090 = vmul.f32 %v322, %v748
        %v1091 = vmul.f32 %v323, %v748
        %v1092 = vmul.f32 %v324, %v748
        %v1093 = vmul.f32 %v325, %v753
        %v1094 = vmul.f32 %v326, %v753
        %v1095 = vmul.f32 %v327, %v753
        %v1096 = vmul.f32 %v328, %v753
        %v1097 = vmul.f32 %v329, %v753
        %v1098 = vmul.f32 %v330, %v753
        %v1099 = vmul.f32 %v331, %v758
        %v1100 = vmul.f32 %v332, %v758
        %v1101 = vmul.f32 %v333, %v758
        %v1102 = vmul.f32 %v334, %v758
        %v1103 = vmul.f32 %v335, %v758
        %v1104 = vmul.f32 %v336, %v758
        %v1105 = vmul.f32 %v337, %v763
        %v1106 = vmul.f32 %v338, %v763
        %v1107 = vmul.f32 %v339, %v763
        %v1108 = vmul.f32 %v340, %v763
        %v1109 = vmul.f32 %v341, %v763
        %v1110 = vmul.f32 %v342, %v763
        %v1111 = vmul.f32 %v343, %v768
        %v1112 = vmul.f32 %v344, %v768
        %v1113 = vmul.f32 %v345, %v768
        %v1114 = vmul.f32 %v346, %v768
        %v1115 = vmul.f32 %v347, %v768
        %v1116 = vmul.f32 %v348, %v768
        %v1117 = vmul.f32 %v349, %v773
        %v1118 = vmul.f32 %v350, %v773
        %v1119 = vmul.f32 %v351, %v773
        %v1120 = vmul.f32 %v352, %v773
        %v1121 = vmul.f32 %v353, %v773
        %v1122 = vmul.f32 %v354, %v773
        %v1123 = vmul.f32 %v355, %v778
        %v1124 = vmul.f32 %v356, %v778
        %v1125 = vmul.f32 %v357, %v778
        %v1126 = vmul.f32 %v358, %v778
        %v1127 = vmul.f32 %v359, %v778
        %v1128 = vmul.f32 %v360, %v778
        %v1129 = vmul.f32 %v361, %v783
        %v1130 = vmul.f32 %v362, %v783
        %v1131 = vmul.f32 %v363, %v783
        %v1132 = vmul.f32 %v364, %v783
        %v1133 = vmul.f32 %v365, %v783
        %v1134 = vmul.f32 %v366, %v783
        %v1135 = vmul.f32 %v367, %v788
        %v1136 = vmul.f32 %v368, %v788
        %v1137 = vmul.f32 %v369, %v788
        %v1138 = vmul.f32 %v370, %v788
        %v1139 = vmul.f32 %v371, %v788
        %v1140 = vmul.f32 %v372, %v788
        %v1141 = vmul.f32 %v373, %v793
        %v1142 = vmul.f32 %v374, %v793
        %v1143 = vmul.f32 %v375, %v793
        %v1144 = vmul.f32 %v376, %v793
        %v1145 = vmul.f32 %v377, %v793
        %v1146 = vmul.f32 %v378, %v793
        %v1147 = vmul.f32 %v379, %v798
        %v1148 = vmul.f32 %v380, %v798
        %v1149 = vmul.f32 %v381, %v798
        %v1150 = vmul.f32 %v382, %v798
        %v1151 = vmul.f32 %v383, %v798
        %v1152 = vmul.f32 %v384, %v798
        %v1153 = vmul.f32 %v385, %v803
        %v1154 = vmul.f32 %v386, %v803
        %v1155 = vmul.f32 %v387, %v803
        %v1156 = vmul.f32 %v388, %v803
        %v1157 = vmul.f32 %v389, %v803
        %v1158 = vmul.f32 %v390, %v803
        %v1159 = vmul.f32 %v391, %v808
        %v1160 = vmul.f32 %v392, %v808
        %v1161 = vmul.f32 %v393, %v808
        %v1162 = vmul.f32 %v394, %v808
        %v1163 = vmul.f32 %v395, %v808
        %v1164 = vmul.f32 %v396, %v808
        %v1165 = vmul.f32 %v397, %v813
        %v1166 = vmul.f32 %v398, %v813
        %v1167 = vmul.f32 %v399, %v813
        %v1168 = vmul.f32 %v400, %v813
        %v1169 = vmul.f32 %v401, %v813
        %v1170 = vmul.f32 %v402, %v813
        %v1171 = vmul.f32 %v403, %v818
        %v1172 = vmul.f32 %v404, %v818
        %v1173 = vmul.f32 %v405, %v818
        %v1174 = vmul.f32 %v406, %v818
        %v1175 = vmul.f32 %v407, %v818
        %v1176 = vmul.f32 %v408, %v818
        %v1177 = vmul.f32 %v409, %v823
        %v1178 = vmul.f32 %v410, %v823
        %v1179 = vmul.f32 %v411, %v823
        %v1180 = vmul.f32 %v412, %v823
        %v1181 = vmul.f32 %v413, %v823
        %v1182 = vmul.f32 %v414, %v823
        %v1183 = vmul.f32 %v415, %v828
        %v1184 = vmul.f32 %v416, %v828
        %v1185 = vmul.f32 %v417, %v828
        %v1186 = vmul.f32 %v418, %v828
        %v1187 = vmul.f32 %v419, %v828
        %v1188 = vmul.f32 %v420, %v828
        %v1189 = vmul.f32 %v421, %v833
        %v1190 = vmul.f32 %v422, %v833
        %v1191 = vmul.f32 %v423, %v833
        %v1192 = vmul.f32 %v424, %v833
        %v1193 = vmul.f32 %v425, %v833
        %v1194 = vmul.f32 %v426, %v833
        %v1195 = vmul.f32 %v427, %v838
        %v1196 = vmul.f32 %v428, %v838
        %v1197 = vmul.f32 %v429, %v838
        %v1198 = vmul.f32 %v430, %v838
        %v1199 = vmul.f32 %v431, %v838
        %v1200 = vmul.f32 %v432, %v838
        %v1201 = vmul.f32 %v433, %v843
        %v1202 = vmul.f32 %v434, %v843
        %v1203 = vmul.f32 %v435, %v843
        %v1204 = vmul.f32 %v436, %v843
        %v1205 = vmul.f32 %v437, %v843
        %v1206 = vmul.f32 %v438, %v843
        %v1207 = vmul.f32 %v439, %v848
        %v1208 = vmul.f32 %v440, %v848
        %v1209 = vmul.f32 %v441, %v848
        %v1210 = vmul.f32 %v442, %v848
        %v1211 = vmul.f32 %v443, %v848
        %v1212 = vmul.f32 %v444, %v848
        %v1213 = vmul.f32 %v445, %v853
        %v1214 = vmul.f32 %v446, %v853
        %v1215 = vmul.f32 %v447, %v853
        %v1216 = vmul.f32 %v448, %v853
        %v1217 = vmul.f32 %v449, %v853
        %v1218 = vmul.f32 %v450, %v853
        %v1219 = vmul.f32 %v451, %v858
        %v1220 = vmul.f32 %v452, %v858
        %v1221 = vmul.f32 %v453, %v858
        %v1222 = vmul.f32 %v454, %v858
        %v1223 = vmul.f32 %v455, %v858
        %v1224 = vmul.f32 %v456, %v858
        %v1225 = vmul.f32 %v457, %v863
        %v1226 = vmul.f32 %v458, %v863
        %v1227 = vmul.f32 %v459, %v863
        %v1228 = vmul.f32 %v460, %v863
        %v1229 = vmul.f32 %v461, %v863
        %v1230 = vmul.f32 %v462, %v863
        %v1231 = vmul.f32 %v463, %v868
        %v1232 = vmul.f32 %v464, %v868
        %v1233 = vmul.f32 %v465, %v868
        %v1234 = vmul.f32 %v466, %v868
        %v1235 = vmul.f32 %v467, %v868
        %v1236 = vmul.f32 %v468, %v868
        %v1237 = vmul.f32 %v469, %v873
        %v1238 = vmul.f32 %v470, %v873
        %v1239 = vmul.f32 %v471, %v873
        %v1240 = vmul.f32 %v472, %v873
        %v1241 = vmul.f32 %v473, %v873
        %v1242 = vmul.f32 %v474, %v873
        %v1243 = vmul.f32 %v475, %v878
        %v1244 = vmul.f32 %v476, %v878
        %v1245 = vmul.f32 %v477, %v878
        %v1246 = vmul.f32 %v478, %v878
        %v1247 = vmul.f32 %v479, %v878
        %v1248 = vmul.f32 %v480, %v878
        %v1249 = vmul.f32 %v481, %v883
        %v1250 = vmul.f32 %v482, %v883
        %v1251 = vmul.f32 %v483, %v883
        %v1252 = vmul.f32 %v484, %v883
        %v1253 = vmul.f32 %v485, %v883
        %v1254 = vmul.f32 %v486, %v883
        %v1255 = vmul.f32 %v487, %v888
        %v1256 = vmul.f32 %v488, %v888
        %v1257 = vmul.f32 %v489, %v888
        %v1258 = vmul.f32 %v490, %v888
        %v1259 = vmul.f32 %v491, %v888
        %v1260 = vmul.f32 %v492, %v888
        %v1261 = vmul.f32 %v493, %v893
        %v1262 = vmul.f32 %v494, %v893
        %v1263 = vmul.f32 %v495, %v893
        %v1264 = vmul.f32 %v496, %v893
        %v1265 = vmul.f32 %v497, %v893
        %v1266 = vmul.f32 %v498, %v893
        %v1267 = vmul.f32 %v499, %v898
        %v1268 = vmul.f32 %v500, %v898
        %v1269 = vmul.f32 %v501, %v898
        %v1270 = vmul.f32 %v502, %v898
        %v1271 = vmul.f32 %v503, %v898
        %v1272 = vmul.f32 %v504, %v898
        %v1273 = vmul.f32 %v505, %v903
        %v1274 = vmul.f32 %v506, %v903
        %v1275 = vmul.f32 %v507, %v903
        %v1276 = vmul.f32 %v508, %v903
        %v1277 = vmul.f32 %v509, %v903
        %v1278 = vmul.f32 %v510, %v903
        %v1279 = vmul.f32 %v511, %v908
        %v1280 = vmul.f32 %v512, %v908
        %v1281 = vmul.f32 %v513, %v908
        %v1282 = vmul.f32 %v514, %v908
        %v1283 = vmul.f32 %v515, %v908
        %v1284 = vmul.f32 %v516, %v908
        %v1285 = vmul.f32 %v517, %v913
        %v1286 = vmul.f32 %v518, %v913
        %v1287 = vmul.f32 %v519, %v913
        %v1288 = vmul.f32 %v520, %v913
        %v1289 = vmul.f32 %v521, %v913
        %v1290 = vmul.f32 %v522, %v913
        %v1291 = vmul.f32 %v523, %v918
        %v1292 = vmul.f32 %v524, %v918
        %v1293 = vmul.f32 %v525, %v918
        %v1294 = vmul.f32 %v526, %v918
        %v1295 = vmul.f32 %v527, %v918
        %v1296 = vmul.f32 %v528, %v918
        %v1297 = vmul.f32 %v529, %v923
        %v1298 = vmul.f32 %v530, %v923
        %v1299 = vmul.f32 %v531, %v923
        %v1300 = vmul.f32 %v532, %v923
        %v1301 = vmul.f32 %v533, %v923
        %v1302 = vmul.f32 %v534, %v923
        %v1303 = vmul.f32 %v535, %v928
        %v1304 = vmul.f32 %v536, %v928
        %v1305 = vmul.f32 %v537, %v928
        %v1306 = vmul.f32 %v538, %v928
        %v1307 = vmul.f32 %v539, %v928
        %v1308 = vmul.f32 %v540, %v928
        %v1309 = vmul.f32 %v541, %v933
        %v1310 = vmul.f32 %v542, %v933
        %v1311 = vmul.f32 %v543, %v933
        %v1312 = vmul.f32 %v544, %v933
        %v1313 = vmul.f32 %v545, %v933
        %v1314 = vmul.f32 %v546, %v933
        %v1315 = vmul.f32 %v547, %v938
        %v1316 = vmul.f32 %v548, %v938
        %v1317 = vmul.f32 %v549, %v938
        %v1318 = vmul.f32 %v550, %v938
        %v1319 = vmul.f32 %v551, %v938
        %v1320 = vmul.f32 %v552, %v938
        %v1321 = vmul.f32 %v553, %v943
        %v1322 = vmul.f32 %v554, %v943
        %v1323 = vmul.f32 %v555, %v943
        %v1324 = vmul.f32 %v556, %v943
        %v1325 = vmul.f32 %v557, %v943
        %v1326 = vmul.f32 %v558, %v943
        %v1327 = vmul.f32 %v559, %v948
        %v1328 = vmul.f32 %v560, %v948
        %v1329 = vmul.f32 %v561, %v948
        %v1330 = vmul.f32 %v562, %v948
        %v1331 = vmul.f32 %v563, %v948
        %v1332 = vmul.f32 %v564, %v948
        %v1333 = vmul.f32 %v565, %v953
        %v1334 = vmul.f32 %v566, %v953
        %v1335 = vmul.f32 %v567, %v953
        %v1336 = vmul.f32 %v568, %v953
        %v1337 = vmul.f32 %v569, %v953
        %v1338 = vmul.f32 %v570, %v953
        %1339 = vst [vmem:[%s178] sm:$0xff] %v955
        %1340 = vst [vmem:[%s178 + $0x8] sm:$0xff] %v956
        %1341 = vst [vmem:[%s178 + $0x10] sm:$0xff] %v957
        %1342 = vst [vmem:[%s178 + $0x18] sm:$0xff] %v958
        %1343 = vst [vmem:[%s178 + $0x20] sm:$0xff] %v959
        %1344 = vst [vmem:[%s178 + $0x28] sm:$0xff] %v960
        %1345 = vst [vmem:[%s178 + $0x30] sm:$0xff] %v961
        %1346 = vst [vmem:[%s178 + $0x38] sm:$0xff] %v962
        %1347 = vst [vmem:[%s178 + $0x40] sm:$0xff] %v963
        %1348 = vst [vmem:[%s178 + $0x48] sm:$0xff] %v964
        %1349 = vst [vmem:[%s178 + $0x50] sm:$0xff] %v965
        %1350 = vst [vmem:[%s178 + $0x58] sm:$0xff] %v966
        %1351 = vst [vmem:[%s178 + $0x60] sm:$0xff] %v967
        %1352 = vst [vmem:[%s178 + $0x68] sm:$0xff] %v968
        %1353 = vst [vmem:[%s178 + $0x70] sm:$0xff] %v969
        %1354 = vst [vmem:[%s178 + $0x78] sm:$0xff] %v970
        %1355 = vst [vmem:[%s178 + $0x80] sm:$0xff] %v971
        %1356 = vst [vmem:[%s178 + $0x88] sm:$0xff] %v972
        %1357 = vst [vmem:[%s178 + $0x90] sm:$0xff] %v973
        %1358 = vst [vmem:[%s178 + $0x98] sm:$0xff] %v974
        %1359 = vst [vmem:[%s178 + $0xa0] sm:$0xff] %v975
        %1360 = vst [vmem:[%s178 + $0xa8] sm:$0xff] %v976
        %1361 = vst [vmem:[%s178 + $0xb0] sm:$0xff] %v977
        %1362 = vst [vmem:[%s178 + $0xb8] sm:$0xff] %v978
        %1363 = vst [vmem:[%s178 + $0xc0] sm:$0xff] %v979
        %1364 = vst [vmem:[%s178 + $0xc8] sm:$0xff] %v980
        %1365 = vst [vmem:[%s178 + $0xd0] sm:$0xff] %v981
        %1366 = vst [vmem:[%s178 + $0xd8] sm:$0xff] %v982
        %1367 = vst [vmem:[%s178 + $0xe0] sm:$0xff] %v983
        %1368 = vst [vmem:[%s178 + $0xe8] sm:$0xff] %v984
        %1369 = vst [vmem:[%s178 + $0xf0] sm:$0xff] %v985
        %1370 = vst [vmem:[%s178 + $0xf8] sm:$0xff] %v986
        %1371 = vst [vmem:[%s178 + $0x100] sm:$0xff] %v987
        %1372 = vst [vmem:[%s178 + $0x108] sm:$0xff] %v988
        %1373 = vst [vmem:[%s178 + $0x110] sm:$0xff] %v989
        %1374 = vst [vmem:[%s178 + $0x118] sm:$0xff] %v990
        %1375 = vst [vmem:[%s178 + $0x120] sm:$0xff] %v991
        %1376 = vst [vmem:[%s178 + $0x128] sm:$0xff] %v992
        %1377 = vst [vmem:[%s178 + $0x130] sm:$0xff] %v993
        %1378 = vst [vmem:[%s178 + $0x138] sm:$0xff] %v994
        %1379 = vst [vmem:[%s178 + $0x140] sm:$0xff] %v995
        %1380 = vst [vmem:[%s178 + $0x148] sm:$0xff] %v996
        %1381 = vst [vmem:[%s178 + $0x150] sm:$0xff] %v997
        %1382 = vst [vmem:[%s178 + $0x158] sm:$0xff] %v998
        %1383 = vst [vmem:[%s178 + $0x160] sm:$0xff] %v999
        %1384 = vst [vmem:[%s178 + $0x168] sm:$0xff] %v1000
        %1385 = vst [vmem:[%s178 + $0x170] sm:$0xff] %v1001
        %1386 = vst [vmem:[%s178 + $0x178] sm:$0xff] %v1002
        %1387 = vst [vmem:[%s178 + $0x180] sm:$0xff] %v1003
        %1388 = vst [vmem:[%s178 + $0x188] sm:$0xff] %v1004
        %1389 = vst [vmem:[%s178 + $0x190] sm:$0xff] %v1005
        %1390 = vst [vmem:[%s178 + $0x198] sm:$0xff] %v1006
        %1391 = vst [vmem:[%s178 + $0x1a0] sm:$0xff] %v1007
        %1392 = vst [vmem:[%s178 + $0x1a8] sm:$0xff] %v1008
        %1393 = vst [vmem:[%s178 + $0x1b0] sm:$0xff] %v1009
        %1394 = vst [vmem:[%s178 + $0x1b8] sm:$0xff] %v1010
        %1395 = vst [vmem:[%s178 + $0x1c0] sm:$0xff] %v1011
        %1396 = vst [vmem:[%s178 + $0x1c8] sm:$0xff] %v1012
        %1397 = vst [vmem:[%s178 + $0x1d0] sm:$0xff] %v1013
        %1398 = vst [vmem:[%s178 + $0x1d8] sm:$0xff] %v1014
        %1399 = vst [vmem:[%s178 + $0x1e0] sm:$0xff] %v1015
        %1400 = vst [vmem:[%s178 + $0x1e8] sm:$0xff] %v1016
        %1401 = vst [vmem:[%s178 + $0x1f0] sm:$0xff] %v1017
        %1402 = vst [vmem:[%s178 + $0x1f8] sm:$0xff] %v1018
        %1403 = vst [vmem:[%s178 + $0x200] sm:$0xff] %v1019
        %1404 = vst [vmem:[%s178 + $0x208] sm:$0xff] %v1020
        %1405 = vst [vmem:[%s178 + $0x210] sm:$0xff] %v1021
        %1406 = vst [vmem:[%s178 + $0x218] sm:$0xff] %v1022
        %1407 = vst [vmem:[%s178 + $0x220] sm:$0xff] %v1023
        %1408 = vst [vmem:[%s178 + $0x228] sm:$0xff] %v1024
        %1409 = vst [vmem:[%s178 + $0x230] sm:$0xff] %v1025
        %1410 = vst [vmem:[%s178 + $0x238] sm:$0xff] %v1026
        %1411 = vst [vmem:[%s178 + $0x240] sm:$0xff] %v1027
        %1412 = vst [vmem:[%s178 + $0x248] sm:$0xff] %v1028
        %1413 = vst [vmem:[%s178 + $0x250] sm:$0xff] %v1029
        %1414 = vst [vmem:[%s178 + $0x258] sm:$0xff] %v1030
        %1415 = vst [vmem:[%s178 + $0x260] sm:$0xff] %v1031
        %1416 = vst [vmem:[%s178 + $0x268] sm:$0xff] %v1032
        %1417 = vst [vmem:[%s178 + $0x270] sm:$0xff] %v1033
        %1418 = vst [vmem:[%s178 + $0x278] sm:$0xff] %v1034
        %1419 = vst [vmem:[%s178 + $0x280] sm:$0xff] %v1035
        %1420 = vst [vmem:[%s178 + $0x288] sm:$0xff] %v1036
        %1421 = vst [vmem:[%s178 + $0x290] sm:$0xff] %v1037
        %1422 = vst [vmem:[%s178 + $0x298] sm:$0xff] %v1038
        %1423 = vst [vmem:[%s178 + $0x2a0] sm:$0xff] %v1039
        %1424 = vst [vmem:[%s178 + $0x2a8] sm:$0xff] %v1040
        %1425 = vst [vmem:[%s178 + $0x2b0] sm:$0xff] %v1041
        %1426 = vst [vmem:[%s178 + $0x2b8] sm:$0xff] %v1042
        %1427 = vst [vmem:[%s178 + $0x2c0] sm:$0xff] %v1043
        %1428 = vst [vmem:[%s178 + $0x2c8] sm:$0xff] %v1044
        %1429 = vst [vmem:[%s178 + $0x2d0] sm:$0xff] %v1045
        %1430 = vst [vmem:[%s178 + $0x2d8] sm:$0xff] %v1046
        %1431 = vst [vmem:[%s178 + $0x2e0] sm:$0xff] %v1047
        %1432 = vst [vmem:[%s178 + $0x2e8] sm:$0xff] %v1048
        %1433 = vst [vmem:[%s178 + $0x2f0] sm:$0xff] %v1049
        %1434 = vst [vmem:[%s178 + $0x2f8] sm:$0xff] %v1050
        %1435 = vst [vmem:[%s178 + $0x300] sm:$0xff] %v1051
        %1436 = vst [vmem:[%s178 + $0x308] sm:$0xff] %v1052
        %1437 = vst [vmem:[%s178 + $0x310] sm:$0xff] %v1053
        %1438 = vst [vmem:[%s178 + $0x318] sm:$0xff] %v1054
        %1439 = vst [vmem:[%s178 + $0x320] sm:$0xff] %v1055
        %1440 = vst [vmem:[%s178 + $0x328] sm:$0xff] %v1056
        %1441 = vst [vmem:[%s178 + $0x330] sm:$0xff] %v1057
        %1442 = vst [vmem:[%s178 + $0x338] sm:$0xff] %v1058
        %1443 = vst [vmem:[%s178 + $0x340] sm:$0xff] %v1059
        %1444 = vst [vmem:[%s178 + $0x348] sm:$0xff] %v1060
        %1445 = vst [vmem:[%s178 + $0x350] sm:$0xff] %v1061
        %1446 = vst [vmem:[%s178 + $0x358] sm:$0xff] %v1062
        %1447 = vst [vmem:[%s178 + $0x360] sm:$0xff] %v1063
        %1448 = vst [vmem:[%s178 + $0x368] sm:$0xff] %v1064
        %1449 = vst [vmem:[%s178 + $0x370] sm:$0xff] %v1065
        %1450 = vst [vmem:[%s178 + $0x378] sm:$0xff] %v1066
        %1451 = vst [vmem:[%s178 + $0x380] sm:$0xff] %v1067
        %1452 = vst [vmem:[%s178 + $0x388] sm:$0xff] %v1068
        %1453 = vst [vmem:[%s178 + $0x390] sm:$0xff] %v1069
        %1454 = vst [vmem:[%s178 + $0x398] sm:$0xff] %v1070
        %1455 = vst [vmem:[%s178 + $0x3a0] sm:$0xff] %v1071
        %1456 = vst [vmem:[%s178 + $0x3a8] sm:$0xff] %v1072
        %1457 = vst [vmem:[%s178 + $0x3b0] sm:$0xff] %v1073
        %1458 = vst [vmem:[%s178 + $0x3b8] sm:$0xff] %v1074
        %1459 = vst [vmem:[%s178 + $0x3c0] sm:$0xff] %v1075
        %1460 = vst [vmem:[%s178 + $0x3c8] sm:$0xff] %v1076
        %1461 = vst [vmem:[%s178 + $0x3d0] sm:$0xff] %v1077
        %1462 = vst [vmem:[%s178 + $0x3d8] sm:$0xff] %v1078
        %1463 = vst [vmem:[%s178 + $0x3e0] sm:$0xff] %v1079
        %1464 = vst [vmem:[%s178 + $0x3e8] sm:$0xff] %v1080
        %1465 = vst [vmem:[%s178 + $0x3f0] sm:$0xff] %v1081
        %1466 = vst [vmem:[%s178 + $0x3f8] sm:$0xff] %v1082
        %1467 = vst [vmem:[%s178 + $0x400] sm:$0xff] %v1083
        %1468 = vst [vmem:[%s178 + $0x408] sm:$0xff] %v1084
        %1469 = vst [vmem:[%s178 + $0x410] sm:$0xff] %v1085
        %1470 = vst [vmem:[%s178 + $0x418] sm:$0xff] %v1086
        %1471 = vst [vmem:[%s178 + $0x420] sm:$0xff] %v1087
        %1472 = vst [vmem:[%s178 + $0x428] sm:$0xff] %v1088
        %1473 = vst [vmem:[%s178 + $0x430] sm:$0xff] %v1089
        %1474 = vst [vmem:[%s178 + $0x438] sm:$0xff] %v1090
        %1475 = vst [vmem:[%s178 + $0x440] sm:$0xff] %v1091
        %1476 = vst [vmem:[%s178 + $0x448] sm:$0xff] %v1092
        %1477 = vst [vmem:[%s178 + $0x450] sm:$0xff] %v1093
        %1478 = vst [vmem:[%s178 + $0x458] sm:$0xff] %v1094
        %1479 = vst [vmem:[%s178 + $0x460] sm:$0xff] %v1095
        %1480 = vst [vmem:[%s178 + $0x468] sm:$0xff] %v1096
        %1481 = vst [vmem:[%s178 + $0x470] sm:$0xff] %v1097
        %1482 = vst [vmem:[%s178 + $0x478] sm:$0xff] %v1098
        %1483 = vst [vmem:[%s178 + $0x480] sm:$0xff] %v1099
        %1484 = vst [vmem:[%s178 + $0x488] sm:$0xff] %v1100
        %1485 = vst [vmem:[%s178 + $0x490] sm:$0xff] %v1101
        %1486 = vst [vmem:[%s178 + $0x498] sm:$0xff] %v1102
        %1487 = vst [vmem:[%s178 + $0x4a0] sm:$0xff] %v1103
        %1488 = vst [vmem:[%s178 + $0x4a8] sm:$0xff] %v1104
        %1489 = vst [vmem:[%s178 + $0x4b0] sm:$0xff] %v1105
        %1490 = vst [vmem:[%s178 + $0x4b8] sm:$0xff] %v1106
        %1491 = vst [vmem:[%s178 + $0x4c0] sm:$0xff] %v1107
        %1492 = vst [vmem:[%s178 + $0x4c8] sm:$0xff] %v1108
        %1493 = vst [vmem:[%s178 + $0x4d0] sm:$0xff] %v1109
        %1494 = vst [vmem:[%s178 + $0x4d8] sm:$0xff] %v1110
        %1495 = vst [vmem:[%s178 + $0x4e0] sm:$0xff] %v1111
        %1496 = vst [vmem:[%s178 + $0x4e8] sm:$0xff] %v1112
        %1497 = vst [vmem:[%s178 + $0x4f0] sm:$0xff] %v1113
        %1498 = vst [vmem:[%s178 + $0x4f8] sm:$0xff] %v1114
        %1499 = vst [vmem:[%s178 + $0x500] sm:$0xff] %v1115
        %1500 = vst [vmem:[%s178 + $0x508] sm:$0xff] %v1116
        %1501 = vst [vmem:[%s178 + $0x510] sm:$0xff] %v1117
        %1502 = vst [vmem:[%s178 + $0x518] sm:$0xff] %v1118
        %1503 = vst [vmem:[%s178 + $0x520] sm:$0xff] %v1119
        %1504 = vst [vmem:[%s178 + $0x528] sm:$0xff] %v1120
        %1505 = vst [vmem:[%s178 + $0x530] sm:$0xff] %v1121
        %1506 = vst [vmem:[%s178 + $0x538] sm:$0xff] %v1122
        %1507 = vst [vmem:[%s178 + $0x540] sm:$0xff] %v1123
        %1508 = vst [vmem:[%s178 + $0x548] sm:$0xff] %v1124
        %1509 = vst [vmem:[%s178 + $0x550] sm:$0xff] %v1125
        %1510 = vst [vmem:[%s178 + $0x558] sm:$0xff] %v1126
        %1511 = vst [vmem:[%s178 + $0x560] sm:$0xff] %v1127
        %1512 = vst [vmem:[%s178 + $0x568] sm:$0xff] %v1128
        %1513 = vst [vmem:[%s178 + $0x570] sm:$0xff] %v1129
        %1514 = vst [vmem:[%s178 + $0x578] sm:$0xff] %v1130
        %1515 = vst [vmem:[%s178 + $0x580] sm:$0xff] %v1131
        %1516 = vst [vmem:[%s178 + $0x588] sm:$0xff] %v1132
        %1517 = vst [vmem:[%s178 + $0x590] sm:$0xff] %v1133
        %1518 = vst [vmem:[%s178 + $0x598] sm:$0xff] %v1134
        %1519 = vst [vmem:[%s178 + $0x5a0] sm:$0xff] %v1135
        %1520 = vst [vmem:[%s178 + $0x5a8] sm:$0xff] %v1136
        %1521 = vst [vmem:[%s178 + $0x5b0] sm:$0xff] %v1137
        %1522 = vst [vmem:[%s178 + $0x5b8] sm:$0xff] %v1138
        %1523 = vst [vmem:[%s178 + $0x5c0] sm:$0xff] %v1139
        %1524 = vst [vmem:[%s178 + $0x5c8] sm:$0xff] %v1140
        %1525 = vst [vmem:[%s178 + $0x5d0] sm:$0xff] %v1141
        %1526 = vst [vmem:[%s178 + $0x5d8] sm:$0xff] %v1142
        %1527 = vst [vmem:[%s178 + $0x5e0] sm:$0xff] %v1143
        %1528 = vst [vmem:[%s178 + $0x5e8] sm:$0xff] %v1144
        %1529 = vst [vmem:[%s178 + $0x5f0] sm:$0xff] %v1145
        %1530 = vst [vmem:[%s178 + $0x5f8] sm:$0xff] %v1146
        %1531 = vst [vmem:[%s178 + $0x600] sm:$0xff] %v1147
        %1532 = vst [vmem:[%s178 + $0x608] sm:$0xff] %v1148
        %1533 = vst [vmem:[%s178 + $0x610] sm:$0xff] %v1149
        %1534 = vst [vmem:[%s178 + $0x618] sm:$0xff] %v1150
        %1535 = vst [vmem:[%s178 + $0x620] sm:$0xff] %v1151
        %1536 = vst [vmem:[%s178 + $0x628] sm:$0xff] %v1152
        %1537 = vst [vmem:[%s178 + $0x630] sm:$0xff] %v1153
        %1538 = vst [vmem:[%s178 + $0x638] sm:$0xff] %v1154
        %1539 = vst [vmem:[%s178 + $0x640] sm:$0xff] %v1155
        %1540 = vst [vmem:[%s178 + $0x648] sm:$0xff] %v1156
        %1541 = vst [vmem:[%s178 + $0x650] sm:$0xff] %v1157
        %1542 = vst [vmem:[%s178 + $0x658] sm:$0xff] %v1158
        %1543 = vst [vmem:[%s178 + $0x660] sm:$0xff] %v1159
        %1544 = vst [vmem:[%s178 + $0x668] sm:$0xff] %v1160
        %1545 = vst [vmem:[%s178 + $0x670] sm:$0xff] %v1161
        %1546 = vst [vmem:[%s178 + $0x678] sm:$0xff] %v1162
        %1547 = vst [vmem:[%s178 + $0x680] sm:$0xff] %v1163
        %1548 = vst [vmem:[%s178 + $0x688] sm:$0xff] %v1164
        %1549 = vst [vmem:[%s178 + $0x690] sm:$0xff] %v1165
        %1550 = vst [vmem:[%s178 + $0x698] sm:$0xff] %v1166
        %1551 = vst [vmem:[%s178 + $0x6a0] sm:$0xff] %v1167
        %1552 = vst [vmem:[%s178 + $0x6a8] sm:$0xff] %v1168
        %1553 = vst [vmem:[%s178 + $0x6b0] sm:$0xff] %v1169
        %1554 = vst [vmem:[%s178 + $0x6b8] sm:$0xff] %v1170
        %1555 = vst [vmem:[%s178 + $0x6c0] sm:$0xff] %v1171
        %1556 = vst [vmem:[%s178 + $0x6c8] sm:$0xff] %v1172
        %1557 = vst [vmem:[%s178 + $0x6d0] sm:$0xff] %v1173
        %1558 = vst [vmem:[%s178 + $0x6d8] sm:$0xff] %v1174
        %1559 = vst [vmem:[%s178 + $0x6e0] sm:$0xff] %v1175
        %1560 = vst [vmem:[%s178 + $0x6e8] sm:$0xff] %v1176
        %1561 = vst [vmem:[%s178 + $0x6f0] sm:$0xff] %v1177
        %1562 = vst [vmem:[%s178 + $0x6f8] sm:$0xff] %v1178
        %1563 = vst [vmem:[%s178 + $0x700] sm:$0xff] %v1179
        %1564 = vst [vmem:[%s178 + $0x708] sm:$0xff] %v1180
        %1565 = vst [vmem:[%s178 + $0x710] sm:$0xff] %v1181
        %1566 = vst [vmem:[%s178 + $0x718] sm:$0xff] %v1182
        %1567 = vst [vmem:[%s178 + $0x720] sm:$0xff] %v1183
        %1568 = vst [vmem:[%s178 + $0x728] sm:$0xff] %v1184
        %1569 = vst [vmem:[%s178 + $0x730] sm:$0xff] %v1185
        %1570 = vst [vmem:[%s178 + $0x738] sm:$0xff] %v1186
        %1571 = vst [vmem:[%s178 + $0x740] sm:$0xff] %v1187
        %1572 = vst [vmem:[%s178 + $0x748] sm:$0xff] %v1188
        %1573 = vst [vmem:[%s178 + $0x750] sm:$0xff] %v1189
        %1574 = vst [vmem:[%s178 + $0x758] sm:$0xff] %v1190
        %1575 = vst [vmem:[%s178 + $0x760] sm:$0xff] %v1191
        %1576 = vst [vmem:[%s178 + $0x768] sm:$0xff] %v1192
        %1577 = vst [vmem:[%s178 + $0x770] sm:$0xff] %v1193
        %1578 = vst [vmem:[%s178 + $0x778] sm:$0xff] %v1194
        %1579 = vst [vmem:[%s178 + $0x780] sm:$0xff] %v1195
        %1580 = vst [vmem:[%s178 + $0x788] sm:$0xff] %v1196
        %1581 = vst [vmem:[%s178 + $0x790] sm:$0xff] %v1197
        %1582 = vst [vmem:[%s178 + $0x798] sm:$0xff] %v1198
        %1583 = vst [vmem:[%s178 + $0x7a0] sm:$0xff] %v1199
        %1584 = vst [vmem:[%s178 + $0x7a8] sm:$0xff] %v1200
        %1585 = vst [vmem:[%s178 + $0x7b0] sm:$0xff] %v1201
        %1586 = vst [vmem:[%s178 + $0x7b8] sm:$0xff] %v1202
        %1587 = vst [vmem:[%s178 + $0x7c0] sm:$0xff] %v1203
        %1588 = vst [vmem:[%s178 + $0x7c8] sm:$0xff] %v1204
        %1589 = vst [vmem:[%s178 + $0x7d0] sm:$0xff] %v1205
        %1590 = vst [vmem:[%s178 + $0x7d8] sm:$0xff] %v1206
        %1591 = vst [vmem:[%s178 + $0x7e0] sm:$0xff] %v1207
        %1592 = vst [vmem:[%s178 + $0x7e8] sm:$0xff] %v1208
        %1593 = vst [vmem:[%s178 + $0x7f0] sm:$0xff] %v1209
        %1594 = vst [vmem:[%s178 + $0x7f8] sm:$0xff] %v1210
        %1595 = vst [vmem:[%s178 + $0x800] sm:$0xff] %v1211
        %1596 = vst [vmem:[%s178 + $0x808] sm:$0xff] %v1212
        %1597 = vst [vmem:[%s178 + $0x810] sm:$0xff] %v1213
        %1598 = vst [vmem:[%s178 + $0x818] sm:$0xff] %v1214
        %1599 = vst [vmem:[%s178 + $0x820] sm:$0xff] %v1215
        %1600 = vst [vmem:[%s178 + $0x828] sm:$0xff] %v1216
        %1601 = vst [vmem:[%s178 + $0x830] sm:$0xff] %v1217
        %1602 = vst [vmem:[%s178 + $0x838] sm:$0xff] %v1218
        %1603 = vst [vmem:[%s178 + $0x840] sm:$0xff] %v1219
        %1604 = vst [vmem:[%s178 + $0x848] sm:$0xff] %v1220
        %1605 = vst [vmem:[%s178 + $0x850] sm:$0xff] %v1221
        %1606 = vst [vmem:[%s178 + $0x858] sm:$0xff] %v1222
        %1607 = vst [vmem:[%s178 + $0x860] sm:$0xff] %v1223
        %1608 = vst [vmem:[%s178 + $0x868] sm:$0xff] %v1224
        %1609 = vst [vmem:[%s178 + $0x870] sm:$0xff] %v1225
        %1610 = vst [vmem:[%s178 + $0x878] sm:$0xff] %v1226
        %1611 = vst [vmem:[%s178 + $0x880] sm:$0xff] %v1227
        %1612 = vst [vmem:[%s178 + $0x888] sm:$0xff] %v1228
        %1613 = vst [vmem:[%s178 + $0x890] sm:$0xff] %v1229
        %1614 = vst [vmem:[%s178 + $0x898] sm:$0xff] %v1230
        %1615 = vst [vmem:[%s178 + $0x8a0] sm:$0xff] %v1231
        %1616 = vst [vmem:[%s178 + $0x8a8] sm:$0xff] %v1232
        %1617 = vst [vmem:[%s178 + $0x8b0] sm:$0xff] %v1233
        %1618 = vst [vmem:[%s178 + $0x8b8] sm:$0xff] %v1234
        %1619 = vst [vmem:[%s178 + $0x8c0] sm:$0xff] %v1235
        %1620 = vst [vmem:[%s178 + $0x8c8] sm:$0xff] %v1236
        %1621 = vst [vmem:[%s178 + $0x8d0] sm:$0xff] %v1237
        %1622 = vst [vmem:[%s178 + $0x8d8] sm:$0xff] %v1238
        %1623 = vst [vmem:[%s178 + $0x8e0] sm:$0xff] %v1239
        %1624 = vst [vmem:[%s178 + $0x8e8] sm:$0xff] %v1240
        %1625 = vst [vmem:[%s178 + $0x8f0] sm:$0xff] %v1241
        %1626 = vst [vmem:[%s178 + $0x8f8] sm:$0xff] %v1242
        %1627 = vst [vmem:[%s178 + $0x900] sm:$0xff] %v1243
        %1628 = vst [vmem:[%s178 + $0x908] sm:$0xff] %v1244
        %1629 = vst [vmem:[%s178 + $0x910] sm:$0xff] %v1245
        %1630 = vst [vmem:[%s178 + $0x918] sm:$0xff] %v1246
        %1631 = vst [vmem:[%s178 + $0x920] sm:$0xff] %v1247
        %1632 = vst [vmem:[%s178 + $0x928] sm:$0xff] %v1248
        %1633 = vst [vmem:[%s178 + $0x930] sm:$0xff] %v1249
        %1634 = vst [vmem:[%s178 + $0x938] sm:$0xff] %v1250
        %1635 = vst [vmem:[%s178 + $0x940] sm:$0xff] %v1251
        %1636 = vst [vmem:[%s178 + $0x948] sm:$0xff] %v1252
        %1637 = vst [vmem:[%s178 + $0x950] sm:$0xff] %v1253
        %1638 = vst [vmem:[%s178 + $0x958] sm:$0xff] %v1254
        %1639 = vst [vmem:[%s178 + $0x960] sm:$0xff] %v1255
        %1640 = vst [vmem:[%s178 + $0x968] sm:$0xff] %v1256
        %1641 = vst [vmem:[%s178 + $0x970] sm:$0xff] %v1257
        %1642 = vst [vmem:[%s178 + $0x978] sm:$0xff] %v1258
        %1643 = vst [vmem:[%s178 + $0x980] sm:$0xff] %v1259
        %1644 = vst [vmem:[%s178 + $0x988] sm:$0xff] %v1260
        %1645 = vst [vmem:[%s178 + $0x990] sm:$0xff] %v1261
        %1646 = vst [vmem:[%s178 + $0x998] sm:$0xff] %v1262
        %1647 = vst [vmem:[%s178 + $0x9a0] sm:$0xff] %v1263
        %1648 = vst [vmem:[%s178 + $0x9a8] sm:$0xff] %v1264
        %1649 = vst [vmem:[%s178 + $0x9b0] sm:$0xff] %v1265
        %1650 = vst [vmem:[%s178 + $0x9b8] sm:$0xff] %v1266
        %1651 = vst [vmem:[%s178 + $0x9c0] sm:$0xff] %v1267
        %1652 = vst [vmem:[%s178 + $0x9c8] sm:$0xff] %v1268
        %1653 = vst [vmem:[%s178 + $0x9d0] sm:$0xff] %v1269
        %1654 = vst [vmem:[%s178 + $0x9d8] sm:$0xff] %v1270
        %1655 = vst [vmem:[%s178 + $0x9e0] sm:$0xff] %v1271
        %1656 = vst [vmem:[%s178 + $0x9e8] sm:$0xff] %v1272
        %1657 = vst [vmem:[%s178 + $0x9f0] sm:$0xff] %v1273
        %1658 = vst [vmem:[%s178 + $0x9f8] sm:$0xff] %v1274
        %1659 = vst [vmem:[%s178 + $0xa00] sm:$0xff] %v1275
        %1660 = vst [vmem:[%s178 + $0xa08] sm:$0xff] %v1276
        %1661 = vst [vmem:[%s178 + $0xa10] sm:$0xff] %v1277
        %1662 = vst [vmem:[%s178 + $0xa18] sm:$0xff] %v1278
        %1663 = vst [vmem:[%s178 + $0xa20] sm:$0xff] %v1279
        %1664 = vst [vmem:[%s178 + $0xa28] sm:$0xff] %v1280
        %1665 = vst [vmem:[%s178 + $0xa30] sm:$0xff] %v1281
        %1666 = vst [vmem:[%s178 + $0xa38] sm:$0xff] %v1282
        %1667 = vst [vmem:[%s178 + $0xa40] sm:$0xff] %v1283
        %1668 = vst [vmem:[%s178 + $0xa48] sm:$0xff] %v1284
        %1669 = vst [vmem:[%s178 + $0xa50] sm:$0xff] %v1285
        %1670 = vst [vmem:[%s178 + $0xa58] sm:$0xff] %v1286
        %1671 = vst [vmem:[%s178 + $0xa60] sm:$0xff] %v1287
        %1672 = vst [vmem:[%s178 + $0xa68] sm:$0xff] %v1288
        %1673 = vst [vmem:[%s178 + $0xa70] sm:$0xff] %v1289
        %1674 = vst [vmem:[%s178 + $0xa78] sm:$0xff] %v1290
        %1675 = vst [vmem:[%s178 + $0xa80] sm:$0xff] %v1291
        %1676 = vst [vmem:[%s178 + $0xa88] sm:$0xff] %v1292
        %1677 = vst [vmem:[%s178 + $0xa90] sm:$0xff] %v1293
        %1678 = vst [vmem:[%s178 + $0xa98] sm:$0xff] %v1294
        %1679 = vst [vmem:[%s178 + $0xaa0] sm:$0xff] %v1295
        %1680 = vst [vmem:[%s178 + $0xaa8] sm:$0xff] %v1296
        %1681 = vst [vmem:[%s178 + $0xab0] sm:$0xff] %v1297
        %1682 = vst [vmem:[%s178 + $0xab8] sm:$0xff] %v1298
        %1683 = vst [vmem:[%s178 + $0xac0] sm:$0xff] %v1299
        %1684 = vst [vmem:[%s178 + $0xac8] sm:$0xff] %v1300
        %1685 = vst [vmem:[%s178 + $0xad0] sm:$0xff] %v1301
        %1686 = vst [vmem:[%s178 + $0xad8] sm:$0xff] %v1302
        %1687 = vst [vmem:[%s178 + $0xae0] sm:$0xff] %v1303
        %1688 = vst [vmem:[%s178 + $0xae8] sm:$0xff] %v1304
        %1689 = vst [vmem:[%s178 + $0xaf0] sm:$0xff] %v1305
        %1690 = vst [vmem:[%s178 + $0xaf8] sm:$0xff] %v1306
        %1691 = vst [vmem:[%s178 + $0xb00] sm:$0xff] %v1307
        %1692 = vst [vmem:[%s178 + $0xb08] sm:$0xff] %v1308
        %1693 = vst [vmem:[%s178 + $0xb10] sm:$0xff] %v1309
        %1694 = vst [vmem:[%s178 + $0xb18] sm:$0xff] %v1310
        %1695 = vst [vmem:[%s178 + $0xb20] sm:$0xff] %v1311
        %1696 = vst [vmem:[%s178 + $0xb28] sm:$0xff] %v1312
        %1697 = vst [vmem:[%s178 + $0xb30] sm:$0xff] %v1313
        %1698 = vst [vmem:[%s178 + $0xb38] sm:$0xff] %v1314
        %1699 = vst [vmem:[%s178 + $0xb40] sm:$0xff] %v1315
        %1700 = vst [vmem:[%s178 + $0xb48] sm:$0xff] %v1316
        %1701 = vst [vmem:[%s178 + $0xb50] sm:$0xff] %v1317
        %1702 = vst [vmem:[%s178 + $0xb58] sm:$0xff] %v1318
        %1703 = vst [vmem:[%s178 + $0xb60] sm:$0xff] %v1319
        %1704 = vst [vmem:[%s178 + $0xb68] sm:$0xff] %v1320
        %1705 = vst [vmem:[%s178 + $0xb70] sm:$0xff] %v1321
        %1706 = vst [vmem:[%s178 + $0xb78] sm:$0xff] %v1322
        %1707 = vst [vmem:[%s178 + $0xb80] sm:$0xff] %v1323
        %1708 = vst [vmem:[%s178 + $0xb88] sm:$0xff] %v1324
        %1709 = vst [vmem:[%s178 + $0xb90] sm:$0xff] %v1325
        %1710 = vst [vmem:[%s178 + $0xb98] sm:$0xff] %v1326
        %1711 = vst [vmem:[%s178 + $0xba0] sm:$0xff] %v1327
        %1712 = vst [vmem:[%s178 + $0xba8] sm:$0xff] %v1328
        %1713 = vst [vmem:[%s178 + $0xbb0] sm:$0xff] %v1329
        %1714 = vst [vmem:[%s178 + $0xbb8] sm:$0xff] %v1330
        %1715 = vst [vmem:[%s178 + $0xbc0] sm:$0xff] %v1331
        %1716 = vst [vmem:[%s178 + $0xbc8] sm:$0xff] %v1332
        %1717 = vst [vmem:[%s178 + $0xbd0] sm:$0xff] %v1333
        %1718 = vst [vmem:[%s178 + $0xbd8] sm:$0xff] %v1334
        %1719 = vst [vmem:[%s178 + $0xbe0] sm:$0xff] %v1335
        %1720 = vst [vmem:[%s178 + $0xbe8] sm:$0xff] %v1336
        %1721 = vst [vmem:[%s178 + $0xbf0] sm:$0xff] %v1337
        %1722 = vst [vmem:[%s178 + $0xbf8] sm:$0xff] %v1338
        %s1723 = sand.u32 %s79, 1
        %s1724 = scalar_lea.sflag [#allocation4], %s1723
        %s1725 = sand.u32 %s79, 1
        %s1726 = smul.addr %s1725, 3072
        %s1727 = scalar_lea.vmem [#allocation5], %s1726
        // Predicated region
        $region33: #{tpu_custom_call.1} parent=27 // pred_check
          %p1728 = pneg %p89
        $region34: #{tpu_custom_call.1} parent=27 // pred_check_branch
          %1730 = sbr.rel (%p1728) target = $region36
        $region35: #{tpu_custom_call.1} parent=27 // pred_region
          %s1731 = smul.u32 64, %s19
          %s1733 = ssub.s32 49152, 49152
          %1734 = vsyncadd %s1724, %s1733
          %s1735 = smul.addr %s1731, 6
          %s1736 = smul.addr %s1735, 128
          %s1737 = scalar_lea.hbm %s2, %s1736
          %s1738 = sshll.u32 %s1727, 4
          %s1739 = int_to_ptr.vmem [resolvable:$true] %s1738
          %1744 = dma.vmem_to_hbm [thread:$0]  %s1739, 49152, %s1737, %s1724, 768, 768, 48
        $region36: #{tpu_custom_call.1} parent=27 // pred_fallthru
          _
      $region28: #{tpu_custom_call.1} parent=5 // pred_fallthru
        _
      %p1745 = scmp.le.s32.totalorder 2, %s14
      // Predicated region
      $region37: #{tpu_custom_call.1} parent=5 // pred_check
        %p1746 = pneg %p1745
      $region38: #{tpu_custom_call.1} parent=5 // pred_check_branch
        %1748 = sbr.rel (%p1746) target = $region40
      $region39: #{tpu_custom_call.1} parent=5 // pred_region
        %s1749 = ssub.s32 %s14, 2
        // Predicated region
        $region41: #{tpu_custom_call.1} parent=39 // pred_check
          %p1750 = pneg %p95
        $region42: #{tpu_custom_call.1} parent=39 // pred_check_branch
          %1752 = sbr.rel (%p1750) target = $region44
        $region43: #{tpu_custom_call.1} parent=39 // pred_region
          %s1753 = sand.u32 %s80, 1
          %s1754 = scalar_lea.sflag [#allocation4], %s1753
          %s1755 = sand.u32 %s80, 1
          %s1756 = smul.addr %s1755, 3072
          %s1757 = scalar_lea.vmem [#allocation5], %s1756
          %1758 = dma.done %s1754, 49152
        $region44: #{tpu_custom_call.1} parent=39 // pred_fallthru
          _
      $region40: #{tpu_custom_call.1} parent=5 // pred_fallthru
        _
    $region6: #{tpu_custom_call.1} parent=1 // loop_footer
      %s18 = sadd.s32 1, %s14
    $region7: #{tpu_custom_call.1} parent=1 // loop_footer_branch
      %13 = sbr.rel target = $region3
    $region8: #{tpu_custom_call.1} parent=1 // loop_exit
      _
    %1759 = vsyncpa [#allocation3], 1
    %s1760 = scalar_lea.sflag [#allocation3], 1
    %1761 = vsyncpa %s1760, 1
    %1762 = vsyncpa [#allocation4], 1
    %s1763 = scalar_lea.sflag [#allocation4], 1
    %1764 = vsyncpa %s1763, 1

</llo_original>
